<compile_context>
chip_gen: v7x
topology: tpu7x:2x2x1
jax: 0.10.0
libtpu: 0.0.40
codegen_flags: <defaults>
</compile_context>

<pallas_src>
import functools

import jax
import jax.numpy as jnp
from jax import lax
from jax.experimental import pallas as pl
from jax.experimental.pallas import tpu as pltpu

# Full-f32 matmuls everywhere (host-side fold, reference, kernel) so the
# folded-weight path matches the unfolded reference to tight tolerance.
jax.config.update("jax_default_matmul_precision", "highest")


def _mlp_kernel(num_rem,
                xt_ref, w0_ref, b0_ref, whid_ref, bhid_ref,
                wout_ref, bout_ref, ot_ref):
    """Fused PinnNet forward for one batch tile, batch-on-lanes layout.

    xt_ref   : (IN, TB)     transposed input tile (batch on the lane axis)
    w0_ref   : (H, IN)      folded (input Linear ∘ hidden[0]) weight, torch layout
    b0_ref   : (H, 1)       folded bias (column)
    whid_ref : (Lr, H, H)   remaining hidden weights, torch layout
    bhid_ref : (Lr, H, 1)   remaining hidden biases (columns)
    wout_ref : (O, H)       output weight, torch layout
    bout_ref : (O, 1)       output bias (column)
    ot_ref   : (O, TB)      transposed output tile (lane-dense stores)
    """
    # Folded first layer: tanh(W0 @ x_t + b0). No in-kernel transposes.
    h = jnp.tanh(
        jnp.dot(w0_ref[...], xt_ref[...], preferred_element_type=jnp.float32)
        + b0_ref[...])

    # Remaining hidden layers. Static unroll for small depth; fori_loop for
    # deeper nets so code size / vreg pressure stays bounded.
    if num_rem > 0:
        if num_rem <= 4:
            for l in range(num_rem):
                h = jnp.tanh(
                    jnp.dot(whid_ref[l], h, preferred_element_type=jnp.float32)
                    + bhid_ref[l])
        else:
            def body(l, h):
                return jnp.tanh(
                    jnp.dot(whid_ref[l], h, preferred_element_type=jnp.float32)
                    + bhid_ref[l])
            h = lax.fori_loop(0, num_rem, body, h)

    # Output layer: (O, H) @ (H, TB) -> (O, TB); bias broadcast over lanes.
    out_t = (jnp.dot(wout_ref[...], h, preferred_element_type=jnp.float32)
             + bout_ref[...])
    ot_ref[...] = out_t.astype(ot_ref.dtype)


def _choose_batch_tile(n, requested=None, *, cap=4096, num_splits=2):
    """Pick a lane-dense batch tile.

    Targets `num_splits` grid steps (keeps both v7x TensorCores busy via
    dimension_semantics=('parallel',)); on single-TC v5e/v6e the extra step
    costs ~600 cycles, which is negligible.  Tiles are multiples of 128 and
    capped so per-tile VMEM stays tiny on every generation.
    """
    if requested is not None:
        assert requested % 128 == 0, "batch_tile must be a multiple of 128"
        return requested
    target = pl.cdiv(n, num_splits)
    tile = ((target + 127) // 128) * 128
    return max(128, min(cap, tile))


def pinn_net_forward(x, params, *, num_layers, batch_tile=None):
    """Fused PinnNet forward pass with Pallas.

    x: (N, input_size) float32
    params: dict in torch layout:
        w_in (H, IN), b_in (1, H), w_hid (L, H, H), b_hid (L, 1, H),
        w_out (O, H), b_out (1, O)
    """
    assert num_layers >= 1, "kernel folds the input Linear; needs num_layers >= 1"

    N, in_size = x.shape
    H = params["w_in"].shape[0]
    O = params["w_out"].shape[0]

    # ---------- host-side parameter prep (done once, exact algebra) ----------
    w_in, b_in = params["w_in"], params["b_in"]          # (H, IN), (1, H)
    w_hid, b_hid = params["w_hid"], params["b_hid"]      # (L, H, H), (L, 1, H)
    w_out, b_out = params["w_out"], params["b_out"]      # (O, H), (1, O)

    # Fold input Linear into the first hidden Linear (no activation between):
    #   tanh(W1 @ (W_in @ x_t + b_in_col) + b1_col)
    # = tanh((W1 @ W_in) @ x_t + (W1 @ b_in_col + b1_col))
    # NOTE: folding changes FP association vs. the unfolded reference; fine at
    # these sizes under 1e-5, revisit for very large H / ill-conditioned weights.
    w0 = w_hid[0] @ w_in                                 # (H, IN)
    b0_col = w_hid[0] @ b_in.T + b_hid[0].T              # (H, 1)

    num_rem = num_layers - 1
    if num_rem > 0:
        w_hid_r = w_hid[1:]                              # (Lr, H, H) torch layout
        b_hid_r = jnp.transpose(b_hid[1:], (0, 2, 1))    # (Lr, H, 1) columns
    else:
        # Dummy stack (never read: zero-trip loop in the kernel).
        w_hid_r = jnp.zeros((1, H, H), w_hid.dtype)
        b_hid_r = jnp.zeros((1, H, 1), b_hid.dtype)
    Lr = int(w_hid_r.shape[0])
    b_out_col = b_out.reshape(O, 1)                      # (O, 1) column bias

    # Batch on the lane axis (cheap host transpose: IN is tiny).
    x_t = x.T                                            # (IN, N)

    tb = _choose_batch_tile(N, batch_tile)
    grid = (pl.cdiv(N, tb),)
    # No host-side padding: the last (possibly partial) block reads stale
    # columns which are column-local and masked out on the partial write.

    kernel = functools.partial(_mlp_kernel, num_rem)

    weight_bytes = 4 * int(w0.size + b0_col.size + w_hid_r.size
                           + b_hid_r.size + w_out.size + b_out_col.size)
    cost = pl.CostEstimate(
        flops=2 * N * (in_size * H + num_rem * H * H + H * O),
        transcendentals=N * H * num_layers,
        bytes_accessed=4 * N * (in_size + O) + weight_bytes,
    )

    out_t = pl.pallas_call(
        kernel,
        out_shape=jax.ShapeDtypeStruct((O, N), x.dtype),
        grid_spec=pltpu.PrefetchScalarGridSpec(
            num_scalar_prefetch=0,
            grid=grid,
            in_specs=[
                # x_t: tiled over batch (lane axis, parallel grid axis)
                pl.BlockSpec((in_size, tb), lambda i: (0, i)),
                # weights / biases: full arrays, resident across the grid
                pl.BlockSpec((H, in_size), lambda i: (0, 0)),
                pl.BlockSpec((H, 1), lambda i: (0, 0)),
                pl.BlockSpec((Lr, H, H), lambda i: (0, 0, 0)),
                pl.BlockSpec((Lr, H, 1), lambda i: (0, 0, 0)),
                pl.BlockSpec((O, H), lambda i: (0, 0)),
                pl.BlockSpec((O, 1), lambda i: (0, 0)),
            ],
            # Lane-dense transposed output: (O, batch_tile) block per step.
            out_specs=pl.BlockSpec((O, tb), lambda i: (0, i)),
        ),
        compiler_params=pltpu.CompilerParams(
            dimension_semantics=("parallel",)),
        cost_estimate=cost,
    )(x_t, w0, b0_col, w_hid_r, b_hid_r, w_out, b_out_col)

    # Back to (N, O) row-major.
    return out_t.T


def init_pinn_params(key, input_size, num_layers, hidden_size, output_size):
    """Deterministic init mimicking torch.nn.Linear default (U(-1/sqrt(fan_in), +))."""
    def linear_init(k, out_f, in_f):
        kw, kb = jax.random.split(k)
        bound = 1.0 / jnp.sqrt(jnp.float32(in_f))
        w = jax.random.uniform(kw, (out_f, in_f), jnp.float32, -bound, bound)
        b = jax.random.uniform(kb, (out_f,), jnp.float32, -bound, bound)
        return w, b

    keys = jax.random.split(key, 2 + num_layers)
    w_in, b_in = linear_init(keys[0], hidden_size, input_size)
    w_hid_list, b_hid_list = [], []
    for l in range(num_layers):
        w, b = linear_init(keys[1 + l], hidden_size, hidden_size)
        w_hid_list.append(w)
        b_hid_list.append(b)
    w_out, b_out = linear_init(keys[-1], output_size, hidden_size)

    return {
        "w_in": w_in,
        "b_in": b_in.reshape(1, hidden_size),
        "w_hid": jnp.stack(w_hid_list, axis=0),               # (L, H, H)
        "b_hid": jnp.stack(b_hid_list, axis=0)[:, None, :],   # (L, 1, H)
        "w_out": w_out,
        "b_out": b_out.reshape(1, output_size),
    }


def pinn_net_reference(x, params, *, num_layers):
    """Pure-JAX reference of the same forward (unfused, unfolded), for validation."""
    h = x @ params["w_in"].T + params["b_in"]
    for l in range(num_layers):
        h = jnp.tanh(h @ params["w_hid"][l].T + params["b_hid"][l])
    return h @ params["w_out"].T + params["b_out"]


if __name__ == "__main__":
    # Small shapes consistent with the module's forward (MLP on (batch, features)).
    INPUT_SIZE = 4
    HIDDEN_SIZE = 32
    OUTPUT_SIZE = 1
    NUM_LAYERS = 2
    BATCH = 512          # -> batch_tile 256, 2 parallel grid steps (v7x megacore)

    key = jax.random.PRNGKey(0)
    k_params, k_x = jax.random.split(key)

    params = init_pinn_params(k_params, INPUT_SIZE, NUM_LAYERS, HIDDEN_SIZE, OUTPUT_SIZE)
    x = jax.random.normal(k_x, (BATCH, INPUT_SIZE), jnp.float32)

    out = pinn_net_forward(x, params, num_layers=NUM_LAYERS)
    out = jax.block_until_ready(out)

    ref = pinn_net_reference(x, params, num_layers=NUM_LAYERS)
    assert out.shape == (BATCH, OUTPUT_SIZE)
    assert jnp.allclose(out, ref, rtol=1e-5, atol=1e-5), "Pallas output mismatch vs reference"

    print("KERNEL_OK")
</pallas_src>

<mosaic_0001>
module attributes {stable_mosaic.version = 11 : i64} {
  func.func @_mlp_kernel(%arg0: i32, %arg1: memref<4x256xf32, #tpu.memory_space<vmem>>, %arg2: memref<32x4xf32, #tpu.memory_space<vmem>>, %arg3: memref<32x1xf32, #tpu.memory_space<vmem>>, %arg4: memref<1x32x32xf32, #tpu.memory_space<vmem>>, %arg5: memref<1x32x1xf32, #tpu.memory_space<vmem>>, %arg6: memref<1x32xf32, #tpu.memory_space<vmem>>, %arg7: memref<1x1xf32, #tpu.memory_space<vmem>>, %arg8: memref<1x256xf32, #tpu.memory_space<vmem>>) attributes {dimension_semantics = [#tpu.dimension_semantics<parallel>], iteration_bounds = array<i64: 2>, scalar_prefetch = 0 : i64, scratch_operands = 0 : i64, tpu.core_type = #tpu.core_type<tc>, window_params = [{transform_indices = @transform_0, window_bounds = array<i64: 4, 256>}, {pipeline_mode = #tpu.pipeline_mode<synchronous>, transform_indices = @transform_1, window_bounds = array<i64: 32, 4>}, {pipeline_mode = #tpu.pipeline_mode<synchronous>, transform_indices = @transform_2, window_bounds = array<i64: 32, 1>}, {pipeline_mode = #tpu.pipeline_mode<synchronous>, transform_indices = @transform_3, window_bounds = array<i64: 1, 32, 32>}, {pipeline_mode = #tpu.pipeline_mode<synchronous>, transform_indices = @transform_4, window_bounds = array<i64: 1, 32, 1>}, {pipeline_mode = #tpu.pipeline_mode<synchronous>, transform_indices = @transform_5, window_bounds = array<i64: 1, 32>}, {pipeline_mode = #tpu.pipeline_mode<synchronous>, transform_indices = @transform_6, window_bounds = array<i64: 1, 1>}, {transform_indices = @transform_7, window_bounds = array<i64: 1, 256>}]} {
    %c0 = arith.constant 0 : index
    %c0_0 = arith.constant 0 : index
    %0 = vector.load %arg2[%c0, %c0_0] : memref<32x4xf32, #tpu.memory_space<vmem>>, vector<32x4xf32>
    %c0_1 = arith.constant 0 : index
    %c0_2 = arith.constant 0 : index
    %1 = vector.load %arg1[%c0_1, %c0_2] : memref<4x256xf32, #tpu.memory_space<vmem>>, vector<4x256xf32>
    %cst = arith.constant dense<0.000000e+00> : vector<32x256xf32>
    %2 = tpu.matmul %0, %1, %cst {dimension_numbers = #tpu.dot_dimension_numbers<[1], [0], [0], [1], [0, 0, 1, 1], [], []>, precision = #tpu.contract_precision<fp32>} : vector<32x4xf32>, vector<4x256xf32>, vector<32x256xf32> -> vector<32x256xf32>
    %c0_3 = arith.constant 0 : index
    %c0_4 = arith.constant 0 : index
    %3 = vector.load %arg3[%c0_3, %c0_4] : memref<32x1xf32, #tpu.memory_space<vmem>>, vector<32x1xf32>
    %4 = vector.broadcast %3 : vector<32x1xf32> to vector<32x256xf32>
    %5 = arith.addf %2, %4 : vector<32x256xf32>
    %6 = math.tanh %5 : vector<32x256xf32>
    %c0_5 = arith.constant 0 : index
    %c0_6 = arith.constant 0 : index
    %c0_7 = arith.constant 0 : index
    %7 = vector.load %arg4[%c0_5, %c0_6, %c0_7] : memref<1x32x32xf32, #tpu.memory_space<vmem>>, vector<1x32x32xf32>
    %8 = vector.shape_cast %7 : vector<1x32x32xf32> to vector<32x32xf32>
    %cst_8 = arith.constant dense<0.000000e+00> : vector<32x256xf32>
    %9 = tpu.matmul %8, %6, %cst_8 {dimension_numbers = #tpu.dot_dimension_numbers<[1], [0], [0], [1], [0, 0, 1, 1], [], []>, precision = #tpu.contract_precision<fp32>} : vector<32x32xf32>, vector<32x256xf32>, vector<32x256xf32> -> vector<32x256xf32>
    %c0_9 = arith.constant 0 : index
    %c0_10 = arith.constant 0 : index
    %c0_11 = arith.constant 0 : index
    %10 = vector.load %arg5[%c0_9, %c0_10, %c0_11] : memref<1x32x1xf32, #tpu.memory_space<vmem>>, vector<1x32x1xf32>
    %11 = vector.shape_cast %10 : vector<1x32x1xf32> to vector<32x1xf32>
    %12 = vector.broadcast %11 : vector<32x1xf32> to vector<32x256xf32>
    %13 = arith.addf %9, %12 : vector<32x256xf32>
    %14 = math.tanh %13 : vector<32x256xf32>
    %c0_12 = arith.constant 0 : index
    %c0_13 = arith.constant 0 : index
    %15 = vector.load %arg6[%c0_12, %c0_13] : memref<1x32xf32, #tpu.memory_space<vmem>>, vector<1x32xf32>
    %cst_14 = arith.constant dense<0.000000e+00> : vector<1x256xf32>
    %16 = tpu.matmul %15, %14, %cst_14 {dimension_numbers = #tpu.dot_dimension_numbers<[1], [0], [0], [1], [0, 0, 1, 1], [], []>, precision = #tpu.contract_precision<fp32>} : vector<1x32xf32>, vector<32x256xf32>, vector<1x256xf32> -> vector<1x256xf32>
    %c0_15 = arith.constant 0 : index
    %c0_16 = arith.constant 0 : index
    %17 = vector.load %arg7[%c0_15, %c0_16] : memref<1x1xf32, #tpu.memory_space<vmem>>, vector<1x1xf32>
    %18 = vector.broadcast %17 : vector<1x1xf32> to vector<1x256xf32>
    %19 = arith.addf %16, %18 : vector<1x256xf32>
    %c0_17 = arith.constant 0 : index
    %c0_18 = arith.constant 0 : index
    %20 = vector.load %arg8[%c0_17, %c0_18] : memref<1x256xf32, #tpu.memory_space<vmem>>, vector<1x256xf32>
    tpu.vector_store %arg8[%c0_17, %c0_18], %19 {strides = array<i32>} : memref<1x256xf32, #tpu.memory_space<vmem>>, vector<1x256xf32>,
    return
  }
  func.func @transform_0(%arg0: i32) -> (i32, i32) {
    %c0_i32 = arith.constant 0 : i32
    %c0_i32_0 = arith.constant 0 : i32
    return %c0_i32, %arg0 : i32, i32
  }
  func.func @transform_1(%arg0: i32) -> (i32, i32) {
    %c0_i32 = arith.constant 0 : i32
    %c0_i32_0 = arith.constant 0 : i32
    %c0_i32_1 = arith.constant 0 : i32
    return %c0_i32, %c0_i32_0 : i32, i32
  }
  func.func @transform_2(%arg0: i32) -> (i32, i32) {
    %c0_i32 = arith.constant 0 : i32
    %c0_i32_0 = arith.constant 0 : i32
    %c0_i32_1 = arith.constant 0 : i32
    return %c0_i32, %c0_i32_0 : i32, i32
  }
  func.func @transform_3(%arg0: i32) -> (i32, i32, i32) {
    %c0_i32 = arith.constant 0 : i32
    %c0_i32_0 = arith.constant 0 : i32
    %c0_i32_1 = arith.constant 0 : i32
    %c0_i32_2 = arith.constant 0 : i32
    return %c0_i32, %c0_i32_0, %c0_i32_1 : i32, i32, i32
  }
  func.func @transform_4(%arg0: i32) -> (i32, i32, i32) {
    %c0_i32 = arith.constant 0 : i32
    %c0_i32_0 = arith.constant 0 : i32
    %c0_i32_1 = arith.constant 0 : i32
    %c0_i32_2 = arith.constant 0 : i32
    return %c0_i32, %c0_i32_0, %c0_i32_1 : i32, i32, i32
  }
  func.func @transform_5(%arg0: i32) -> (i32, i32) {
    %c0_i32 = arith.constant 0 : i32
    %c0_i32_0 = arith.constant 0 : i32
    %c0_i32_1 = arith.constant 0 : i32
    return %c0_i32, %c0_i32_0 : i32, i32
  }
  func.func @transform_6(%arg0: i32) -> (i32, i32) {
    %c0_i32 = arith.constant 0 : i32
    %c0_i32_0 = arith.constant 0 : i32
    %c0_i32_1 = arith.constant 0 : i32
    return %c0_i32, %c0_i32_0 : i32, i32
  }
  func.func @transform_7(%arg0: i32) -> (i32, i32) {
    %c0_i32 = arith.constant 0 : i32
    %c0_i32_0 = arith.constant 0 : i32
    return %c0_i32, %arg0 : i32, i32
  }
}

</mosaic_0001>

<llo_original>
// kernel: tpu_custom_call.1
$region0: #{tpu_custom_call.1}
  #allocation0 [shape = 'u32[]', space=smem, size = 0x4, offset = 0x4, fixed_abs, tag = 'smem constant byte address 0x4 - core index']
  #allocation1 [shape = 'u32[144,128]{1,0:T(1,128)}', space=vmem, size = 0x12000, scoped, tag = 'internal scratch']
  #allocation2 [shape = 'f32[1,1]{1,0:T(1,128)S(1)}', space=vmem, size = 0x200, scoped, tag = 'scoped memory for tpu_custom_call.1']
  %s0 = inlined_call_operand.vmem [shape: f32[4,512], index: 0, kind: input, shape index: {}]
  %s1 = inlined_call_operand.vmem [shape: f32[32,4], index: 1, kind: input, shape index: {}]
  %s2 = inlined_call_operand.vmem [shape: f32[32,1], index: 2, kind: input, shape index: {}]
  %s3 = inlined_call_operand.vmem [shape: f32[1,32,32], index: 3, kind: input, shape index: {}]
  %s4 = inlined_call_operand.vmem [shape: f32[1,32,1], index: 4, kind: input, shape index: {}]
  %s5 = inlined_call_operand.vmem [shape: f32[1,32], index: 5, kind: input, shape index: {}]
  %s6 = inlined_call_operand.<no memory space> [shape: f32[1,1], index: 6, kind: input, shape index: {}]
  %s7 = inlined_call_operand.hbm [shape: f32[1,512], index: 7, kind: output, shape index: {}]
  %s8 = sld [smem:[#allocation0]]
  $region61: #{tpu_custom_call.1} parent=0
    _
  %s10 = ssub.s32 1, %s8
  %s11 = scalar_select 0, %s10, %s8
  %v12 = vstv %s6
  %13 = vst [vmem:[#allocation2] sm:$0x1] %v12
  $region1: #{tpu_custom_call.1} parent=0
    #allocation3 [shape = 'u8[2048]{0}', space=vmem, size = 0x800, scoped, tag = 'output window, operand 0']
    #allocation4 [shape = 's32[2]{0}', space=sflag, size = 0x8, scoped, tag = 'scoped memory for tpu_custom_call.1']
    %14 = vsyncpa [#allocation4], 0
    %s15 = scalar_lea.sflag [#allocation4], 1
    %16 = vsyncpa %s15, 0
    loop: start=0, step=1, limit=4
    $region2: #{tpu_custom_call.1} parent=1 // loop_pre_header
      _
    $region3: #{tpu_custom_call.1} parent=1 // loop_header
      %s18 = sphi 0, %s22
      %p19 = scmp.ge.s32.totalorder %s18, 4
      %s28 = sphi 0, %s30
      %s31 = sphi 0, %s28
      %s32 = sphi 0, %s31
      %s48 = sphi 0, %s32
      %s52 = sphi 0, %s52
      %s54 = sphi 0, %s52
      %s55 = sphi 0, %s54
      %s69 = sphi 0, %s55
      %s73 = sphi 0, %s73
      %s75 = sphi 0, %s73
      %s76 = sphi 0, %s75
      %s90 = sphi 0, %s76
      %s94 = sphi 0, %s94
      %s96 = sphi 0, %s94
      %s97 = sphi 0, %s96
      %s111 = sphi 0, %s97
      %s115 = sphi 0, %s115
      %s117 = sphi 0, %s115
      %s118 = sphi 0, %s117
      %s132 = sphi 0, %s118
      %s136 = sphi 0, %s136
      %s138 = sphi 0, %s136
      %s139 = sphi 0, %s138
      %s153 = sphi 0, %s139
      %s157 = sphi 0, %s157
      %s159 = sphi 0, %s157
      %s160 = sphi 0, %s159
      %s174 = sphi 0, %s160
      %s180 = sphi 0, %s182
      %s183 = sphi 0, %s180
      %s184 = sphi 0, %s183
      %s200 = sphi 0, %s184
    $region4: #{tpu_custom_call.1} parent=1 // loop_header_branch
      %21 = sbr.rel (%p19) target = $region8
    $region5: #{tpu_custom_call.1} parent=1 // loop_body
      %s23 = ssub.s32 %s18, 1
      %s24 = ssub.s32 %s18, 2
      %s25 = sadd.s32 %s18, 1
      %s26 = ssub.s32 %s18, %s25
      %p27 = scmp.eq.s32.totalorder %s26, 0
      %s29 = sadd.s32 %s28, 1
      %s30 = scalar_select %p27, %s28, %s29
      %p33 = pneg %p27
      %p34 = scmp.eq.s32.totalorder %s18, 1
      %p35 = por %p33, %p34
      %p36 = scmp.ne.s32.totalorder %s28, %s31
      %p37 = scmp.eq.s32.totalorder %s18, 0
      %p38 = por %p36, %p37
      %p39 = scmp.ne.s32.totalorder %s28, %s31
      %p40 = scmp.eq.s32.totalorder %s23, 1
      %p41 = por %p39, %p40
      %p42 = scmp.ne.s32.totalorder %s31, %s32
      %p43 = scmp.eq.s32.totalorder %s23, 0
      %p44 = por %p42, %p43
      %p45 = scmp.ne.s32.totalorder %s31, %s32
      %p46 = scmp.eq.s32.totalorder %s24, 1
      %p47 = por %p45, %p46
      %p49 = scmp.ne.s32.totalorder %s32, %s48
      %p50 = scmp.eq.s32.totalorder %s24, 0
      %p51 = por %p49, %p50
      %s53 = sadd.s32 %s52, 1
      %p56 = scmp.eq.s32.totalorder %s18, 1
      %p57 = scmp.ne.s32.totalorder %s52, %s54
      %p58 = scmp.eq.s32.totalorder %s18, 0
      %p59 = por %p57, %p58
      %p60 = scmp.ne.s32.totalorder %s52, %s54
      %p61 = scmp.eq.s32.totalorder %s23, 1
      %p62 = por %p60, %p61
      %p63 = scmp.ne.s32.totalorder %s54, %s55
      %p64 = scmp.eq.s32.totalorder %s23, 0
      %p65 = por %p63, %p64
      %p66 = scmp.ne.s32.totalorder %s54, %s55
      %p67 = scmp.eq.s32.totalorder %s24, 1
      %p68 = por %p66, %p67
      %p70 = scmp.ne.s32.totalorder %s55, %s69
      %p71 = scmp.eq.s32.totalorder %s24, 0
      %p72 = por %p70, %p71
      %s74 = sadd.s32 %s73, 1
      %p77 = scmp.eq.s32.totalorder %s18, 1
      %p78 = scmp.ne.s32.totalorder %s73, %s75
      %p79 = scmp.eq.s32.totalorder %s18, 0
      %p80 = por %p78, %p79
      %p81 = scmp.ne.s32.totalorder %s73, %s75
      %p82 = scmp.eq.s32.totalorder %s23, 1
      %p83 = por %p81, %p82
      %p84 = scmp.ne.s32.totalorder %s75, %s76
      %p85 = scmp.eq.s32.totalorder %s23, 0
      %p86 = por %p84, %p85
      %p87 = scmp.ne.s32.totalorder %s75, %s76
      %p88 = scmp.eq.s32.totalorder %s24, 1
      %p89 = por %p87, %p88
      %p91 = scmp.ne.s32.totalorder %s76, %s90
      %p92 = scmp.eq.s32.totalorder %s24, 0
      %p93 = por %p91, %p92
      %s95 = sadd.s32 %s94, 1
      %p98 = scmp.eq.s32.totalorder %s18, 1
      %p99 = scmp.ne.s32.totalorder %s94, %s96
      %p100 = scmp.eq.s32.totalorder %s18, 0
      %p101 = por %p99, %p100
      %p102 = scmp.ne.s32.totalorder %s94, %s96
      %p103 = scmp.eq.s32.totalorder %s23, 1
      %p104 = por %p102, %p103
      %p105 = scmp.ne.s32.totalorder %s96, %s97
      %p106 = scmp.eq.s32.totalorder %s23, 0
      %p107 = por %p105, %p106
      %p108 = scmp.ne.s32.totalorder %s96, %s97
      %p109 = scmp.eq.s32.totalorder %s24, 1
      %p110 = por %p108, %p109
      %p112 = scmp.ne.s32.totalorder %s97, %s111
      %p113 = scmp.eq.s32.totalorder %s24, 0
      %p114 = por %p112, %p113
      %s116 = sadd.s32 %s115, 1
      %p119 = scmp.eq.s32.totalorder %s18, 1
      %p120 = scmp.ne.s32.totalorder %s115, %s117
      %p121 = scmp.eq.s32.totalorder %s18, 0
      %p122 = por %p120, %p121
      %p123 = scmp.ne.s32.totalorder %s115, %s117
      %p124 = scmp.eq.s32.totalorder %s23, 1
      %p125 = por %p123, %p124
      %p126 = scmp.ne.s32.totalorder %s117, %s118
      %p127 = scmp.eq.s32.totalorder %s23, 0
      %p128 = por %p126, %p127
      %p129 = scmp.ne.s32.totalorder %s117, %s118
      %p130 = scmp.eq.s32.totalorder %s24, 1
      %p131 = por %p129, %p130
      %p133 = scmp.ne.s32.totalorder %s118, %s132
      %p134 = scmp.eq.s32.totalorder %s24, 0
      %p135 = por %p133, %p134
      %s137 = sadd.s32 %s136, 1
      %p140 = scmp.eq.s32.totalorder %s18, 1
      %p141 = scmp.ne.s32.totalorder %s136, %s138
      %p142 = scmp.eq.s32.totalorder %s18, 0
      %p143 = por %p141, %p142
      %p144 = scmp.ne.s32.totalorder %s136, %s138
      %p145 = scmp.eq.s32.totalorder %s23, 1
      %p146 = por %p144, %p145
      %p147 = scmp.ne.s32.totalorder %s138, %s139
      %p148 = scmp.eq.s32.totalorder %s23, 0
      %p149 = por %p147, %p148
      %p150 = scmp.ne.s32.totalorder %s138, %s139
      %p151 = scmp.eq.s32.totalorder %s24, 1
      %p152 = por %p150, %p151
      %p154 = scmp.ne.s32.totalorder %s139, %s153
      %p155 = scmp.eq.s32.totalorder %s24, 0
      %p156 = por %p154, %p155
      %s158 = sadd.s32 %s157, 1
      %p161 = scmp.eq.s32.totalorder %s18, 1
      %p162 = scmp.ne.s32.totalorder %s157, %s159
      %p163 = scmp.eq.s32.totalorder %s18, 0
      %p164 = por %p162, %p163
      %p165 = scmp.ne.s32.totalorder %s157, %s159
      %p166 = scmp.eq.s32.totalorder %s23, 1
      %p167 = por %p165, %p166
      %p168 = scmp.ne.s32.totalorder %s159, %s160
      %p169 = scmp.eq.s32.totalorder %s23, 0
      %p170 = por %p168, %p169
      %p171 = scmp.ne.s32.totalorder %s159, %s160
      %p172 = scmp.eq.s32.totalorder %s24, 1
      %p173 = por %p171, %p172
      %p175 = scmp.ne.s32.totalorder %s160, %s174
      %p176 = scmp.eq.s32.totalorder %s24, 0
      %p177 = por %p175, %p176
      %s178 = ssub.s32 %s18, %s25
      %p179 = scmp.eq.s32.totalorder %s178, 0
      %s181 = sadd.s32 %s180, 1
      %s182 = scalar_select %p179, %s180, %s181
      %p185 = pneg %p179
      %p186 = scmp.eq.s32.totalorder %s18, 1
      %p187 = por %p185, %p186
      %p188 = scmp.ne.s32.totalorder %s180, %s183
      %p189 = scmp.eq.s32.totalorder %s18, 0
      %p190 = por %p188, %p189
      %p191 = scmp.ne.s32.totalorder %s180, %s183
      %p192 = scmp.eq.s32.totalorder %s23, 1
      %p193 = por %p191, %p192
      %p194 = scmp.ne.s32.totalorder %s183, %s184
      %p195 = scmp.eq.s32.totalorder %s23, 0
      %p196 = por %p194, %p195
      %p197 = scmp.ne.s32.totalorder %s183, %s184
      %p198 = scmp.eq.s32.totalorder %s24, 1
      %p199 = por %p197, %p198
      %p201 = scmp.ne.s32.totalorder %s184, %s200
      %p202 = scmp.eq.s32.totalorder %s24, 0
      %p203 = por %p201, %p202
      %p204 = scmp.le.s32.totalorder 1, %s18
      %p205 = scmp.lt.s32.totalorder %s18, 3
      %p206 = pnand %p204, %p205
      %p207 = pneg %p206
      // Predicated region
      $region9: #{tpu_custom_call.1} parent=5 // pred_check
        _
      $region10: #{tpu_custom_call.1} parent=5 // pred_check_branch
        %209 = sbr.rel (%p206) target = $region12
      $region11: #{tpu_custom_call.1} parent=5 // pred_region
        %s210 = ssub.s32 %s18, 1
        // Predicated region
        $region13: #{tpu_custom_call.1} parent=11 // pred_check
          %p211 = pneg %p65
        $region14: #{tpu_custom_call.1} parent=11 // pred_check_branch
          %213 = sbr.rel (%p211) target = $region16
        $region15: #{tpu_custom_call.1} parent=11 // pred_region
          _
        $region16: #{tpu_custom_call.1} parent=11 // pred_fallthru
          _
        // Predicated region
        $region17: #{tpu_custom_call.1} parent=11 // pred_check
          %p214 = pneg %p86
        $region18: #{tpu_custom_call.1} parent=11 // pred_check_branch
          %216 = sbr.rel (%p214) target = $region20
        $region19: #{tpu_custom_call.1} parent=11 // pred_region
          _
        $region20: #{tpu_custom_call.1} parent=11 // pred_fallthru
          _
        // Predicated region
        $region21: #{tpu_custom_call.1} parent=11 // pred_check
          %p217 = pneg %p107
        $region22: #{tpu_custom_call.1} parent=11 // pred_check_branch
          %219 = sbr.rel (%p217) target = $region24
        $region23: #{tpu_custom_call.1} parent=11 // pred_region
          _
        $region24: #{tpu_custom_call.1} parent=11 // pred_fallthru
          _
        // Predicated region
        $region25: #{tpu_custom_call.1} parent=11 // pred_check
          %p220 = pneg %p128
        $region26: #{tpu_custom_call.1} parent=11 // pred_check_branch
          %222 = sbr.rel (%p220) target = $region28
        $region27: #{tpu_custom_call.1} parent=11 // pred_region
          _
        $region28: #{tpu_custom_call.1} parent=11 // pred_fallthru
          _
        // Predicated region
        $region29: #{tpu_custom_call.1} parent=11 // pred_check
          %p223 = pneg %p149
        $region30: #{tpu_custom_call.1} parent=11 // pred_check_branch
          %225 = sbr.rel (%p223) target = $region32
        $region31: #{tpu_custom_call.1} parent=11 // pred_region
          _
        $region32: #{tpu_custom_call.1} parent=11 // pred_fallthru
          _
        // Predicated region
        $region33: #{tpu_custom_call.1} parent=11 // pred_check
          %p226 = pneg %p170
        $region34: #{tpu_custom_call.1} parent=11 // pred_check_branch
          %228 = sbr.rel (%p226) target = $region36
        $region35: #{tpu_custom_call.1} parent=11 // pred_region
          _
        $region36: #{tpu_custom_call.1} parent=11 // pred_fallthru
          _
      $region12: #{tpu_custom_call.1} parent=5 // pred_fallthru
        _
      %p229 = scmp.lt.s32.totalorder %s18, 2
      // Predicated region
      $region37: #{tpu_custom_call.1} parent=5 // pred_check
        %p230 = pneg %p229
      $region38: #{tpu_custom_call.1} parent=5 // pred_check_branch
        %232 = sbr.rel (%p230) target = $region40
      $region39: #{tpu_custom_call.1} parent=5 // pred_region
        // Predicated region
        $region41: #{tpu_custom_call.1} parent=39 // pred_check
          %p233 = pneg %p38
        $region42: #{tpu_custom_call.1} parent=39 // pred_check_branch
          %235 = sbr.rel (%p233) target = $region44
        $region43: #{tpu_custom_call.1} parent=39 // pred_region
          %s236 = smul.u32 2, %s18
          %p237 = scmp.lt.s32.totalorder %s236, 3
          %s238 = scalar_select %p237, %s236, 3
          %s239 = smul.addr %s238, 4
          %s240 = scalar_lea.vmem %s0, %s239
          %s241 = smul.u32 2, %s18
        $region44: #{tpu_custom_call.1} parent=39 // pred_fallthru
          _
      $region40: #{tpu_custom_call.1} parent=5 // pred_fallthru
        _
      %p242 = scmp.le.s32.totalorder 1, %s18
      %p243 = scmp.lt.s32.totalorder %s18, 3
      %p244 = pnand %p242, %p243
      %p245 = pneg %p244
      // Predicated region
      $region45: #{tpu_custom_call.1} parent=5 // pred_check
        _
      $region46: #{tpu_custom_call.1} parent=5 // pred_check_branch
        %247 = sbr.rel (%p244) target = $region48
      $region47: #{tpu_custom_call.1} parent=5 // pred_region
        %s248 = ssub.s32 %s18, 1
        %s249 = smul.u32 2, %s23
        %p250 = scmp.lt.s32.totalorder %s249, 3
        %s251 = scalar_select %p250, %s249, 3
        %s252 = smul.addr %s251, 4
        %s253 = scalar_lea.vmem %s0, %s252
        %p254 = pneg %p44
        %p255 = pneg %p41
        %p256 = pneg %p65
        %p257 = pneg %p62
        %p258 = pneg %p86
        %p259 = pneg %p83
        %p260 = pneg %p107
        %p261 = pneg %p104
        %p262 = pneg %p128
        %p263 = pneg %p125
        %p264 = pneg %p149
        %p265 = pneg %p146
        %p266 = pneg %p170
        %p267 = pneg %p167
        %p268 = pneg %p196
        %p269 = pneg %p193
        %s270 = sand.u32 %s183, 1
        %s271 = scalar_lea.sflag [#allocation4], %s270
        %s272 = sand.u32 %s183, 1
        %s273 = smul.addr %s272, 2
        %s274 = scalar_lea.vmem [#allocation3], %s273
        %s275 = smul.u32 2, %s23
        %p276 = scmp.lt.s32.totalorder %s275, 3
        %s277 = scalar_select %p276, %s275, 3
        %s278 = smul.addr %s277, 4
        %s279 = scalar_lea.vmem %s0, %s278
        %s280 = smul.u32 2, %s23
        %s281 = smul.u32 2, %s23
        %v282 = vld [vmem:[%s1] sm:$0xff]
        %v283 = vld [vmem:[%s1 + $0x8] sm:$0xff]
        %v284 = vld [vmem:[%s1 + $0x10] sm:$0xff]
        %v285 = vld [vmem:[%s1 + $0x18] sm:$0xff]
        %v286 = vld [vmem:[%s279] sm:$0xff]
        %v287 = vld [vmem:[%s2] sm:$0xff]
        %v288 = vld [vmem:[%s2 + $0x8] sm:$0xff]
        %v289 = vld [vmem:[%s2 + $0x10] sm:$0xff]
        %v290 = vld [vmem:[%s2 + $0x18] sm:$0xff]
        %292 = vset.pattern.permute.xlu0 0
        %293 = vperm.xlu0 %292, %v287
        %v294 = vpop.permute.xlu0 %293
        %297 = vset.pattern.permute.xlu0 0
        %298 = vperm.xlu0 %297, %v288
        %v299 = vpop.permute.xlu0 %298
        %302 = vset.pattern.permute.xlu0 0
        %303 = vperm.xlu0 %302, %v289
        %v304 = vpop.permute.xlu0 %303
        %307 = vset.pattern.permute.xlu0 0
        %308 = vperm.xlu0 %307, %v290
        %v309 = vpop.permute.xlu0 %308
        %v312 = vcombine.high %v286, %v286
        %vm313 = vcmask 31744
        %v315 = vsel %vm313, %v282, 0
        %v318 = vsel %vm313, %v283, 0
        %v321 = vsel %vm313, %v284, 0
        %v324 = vsel %vm313, %v285, 0
        %vm326 = vcmask 1043456
        %v327 = vsel %vm326, %v286, 0
        %v329 = vsel %vm326, %v312, 0
        %v331 = vand.u32 %v329, 4294901760
        %332 = vmatprep.subr.mxu0 %v331
        %v333 = vand.u32 %v327, 4294901760
        %334 = vmatpush1.msra.mxu0 %v333
        %335 = vmatprep.subr.mxu0 0.0
        %336 = vmatpush1.msra.mxu0 0.0
        %337 = vmatprep.subr.mxu0 0.0
        %338 = vmatpush1.msra.mxu0 0.0
        %339 = vmatprep.subr.mxu0 0.0
        %340 = vmatpush1.msra.mxu0 0.0
        %341 = vmatprep.subr.mxu0 0.0
        %342 = vmatpush1.msra.mxu0 0.0
        %343 = vmatprep.subr.mxu0 0.0
        %344 = vmatpush1.msra.mxu0 0.0
        %345 = vmatprep.subr.mxu0 0.0
        %346 = vmatpush1.msra.mxu0 0.0
        %347 = vmatprep.subr.mxu0 0.0
        %348 = vmatpush1.msra.mxu0 0.0
        %349 = vmatprep.subr.mxu0 0.0
        %350 = vmatpush1.msra.mxu0 0.0
        %351 = vmatprep.subr.mxu0 0.0
        %352 = vmatpush1.msra.mxu0 0.0
        %353 = vmatprep.subr.mxu0 0.0
        %354 = vmatpush1.msra.mxu0 0.0
        %355 = vmatprep.subr.mxu0 0.0
        %356 = vmatpush1.msra.mxu0 0.0
        %357 = vmatprep.subr.mxu0 0.0
        %358 = vmatpush1.msra.mxu0 0.0
        %359 = vmatprep.subr.mxu0 0.0
        %360 = vmatpush1.msra.mxu0 0.0
        %361 = vmatprep.subr.mxu0 0.0
        %362 = vmatpush1.msra.mxu0 0.0
        %363 = vmatprep.subr.mxu0 0.0
        %364 = vmatpush1.msra.mxu0 0.0
        %365 = vmatprep.subr.mxu0 0.0
        %366 = vmatpush1.msra.mxu0 0.0
        %367 = vmatprep.subr.mxu0 0.0
        %368 = vmatpush1.msra.mxu0 0.0
        %369 = vmatprep.subr.mxu0 0.0
        %370 = vmatpush1.msra.mxu0 0.0
        %371 = vmatprep.subr.mxu0 0.0
        %372 = vmatpush1.msra.mxu0 0.0
        %373 = vmatprep.subr.mxu0 0.0
        %374 = vmatpush1.msra.mxu0 0.0
        %375 = vmatprep.subr.mxu0 0.0
        %376 = vmatpush1.msra.mxu0 0.0
        %377 = vmatprep.subr.mxu0 0.0
        %378 = vmatpush1.msra.mxu0 0.0
        %379 = vmatprep.subr.mxu0 0.0
        %380 = vmatpush1.msra.mxu0 0.0
        %381 = vmatprep.subr.mxu0 0.0
        %382 = vmatpush1.msra.mxu0 0.0
        %383 = vmatprep.subr.mxu0 0.0
        %384 = vmatpush1.msra.mxu0 0.0
        %385 = vmatprep.subr.mxu0 0.0
        %386 = vmatpush1.msra.mxu0 0.0
        %387 = vmatprep.subr.mxu0 0.0
        %388 = vmatpush1.msra.mxu0 0.0
        %389 = vmatprep.subr.mxu0 0.0
        %390 = vmatpush1.msra.mxu0 0.0
        %391 = vmatprep.subr.mxu0 0.0
        %392 = vmatpush1.msra.mxu0 0.0
        %393 = vmatprep.subr.mxu0 0.0
        %394 = vmatpush1.msra.mxu0 0.0
        %395 = vmatprep.subr.mxu0 0.0
        %396 = vmatpush1.msra.mxu0 0.0
        %397 = vmatprep.mubr.f32.mxu0 0.0
        %v398 = vand.u32 %v315, 4294901760
        %v399 = vsub.f32 %v315, %v398
        %v400 = vand.u32 %v399, 4294901760
        %v401 = vsub.f32 %v399, %v400
        %v402 = vand.u32 %v401, 4294901760
        %403 = vmatmul.mubr.f32.gmra.mrb[0].mxu0 %v402
        %v404 = vpop.f32.mrb[0].mxu0
        %v405 = vadd.f32 %v294, %v404
        %v406 = vpop.f32.mrb[0].mxu0
        %v407 = vadd.f32 %v294, %v406
        %408 = vmatprep.mubr.f32.mxu0 0.0
        %v409 = vand.u32 %v318, 4294901760
        %v410 = vsub.f32 %v318, %v409
        %v411 = vand.u32 %v410, 4294901760
        %v412 = vsub.f32 %v410, %v411
        %v413 = vand.u32 %v412, 4294901760
        %414 = vmatmul.mubr.f32.gmra.mrb[0].mxu0 %v413
        %v415 = vpop.f32.mrb[0].mxu0
        %v416 = vadd.f32 %v299, %v415
        %v417 = vpop.f32.mrb[0].mxu0
        %v418 = vadd.f32 %v299, %v417
        %419 = vmatprep.mubr.f32.mxu0 0.0
        %v420 = vand.u32 %v321, 4294901760
        %v421 = vsub.f32 %v321, %v420
        %v422 = vand.u32 %v421, 4294901760
        %v423 = vsub.f32 %v421, %v422
        %v424 = vand.u32 %v423, 4294901760
        %425 = vmatmul.mubr.f32.gmra.mrb[0].mxu0 %v424
        %v426 = vpop.f32.mrb[0].mxu0
        %v427 = vadd.f32 %v304, %v426
        %v428 = vpop.f32.mrb[0].mxu0
        %v429 = vadd.f32 %v304, %v428
        %430 = vmatprep.mubr.f32.mxu0 0.0
        %v431 = vand.u32 %v324, 4294901760
        %v432 = vsub.f32 %v324, %v431
        %v433 = vand.u32 %v432, 4294901760
        %v434 = vsub.f32 %v432, %v433
        %v435 = vand.u32 %v434, 4294901760
        %436 = vmatmul.mubr.f32.gmra.mrb[0].mxu0 %v435
        %v437 = vpop.f32.mrb[0].mxu0
        %v438 = vadd.f32 %v309, %v437
        %v439 = vpop.f32.mrb[0].mxu0
        %v440 = vadd.f32 %v309, %v439
        %441 = vdwg.mxu0
        %v442 = vand.u32 %v329, 4294901760
        %v443 = vsub.f32 %v329, %v442
        %v444 = vand.u32 %v443, 4294901760
        %v445 = vsub.f32 %v443, %v444
        %v446 = vand.u32 %v445, 4294901760
        %447 = vmatprep.subr.mxu0 %v446
        %v448 = vand.u32 %v327, 4294901760
        %v449 = vsub.f32 %v327, %v448
        %v450 = vand.u32 %v449, 4294901760
        %v451 = vsub.f32 %v449, %v450
        %v452 = vand.u32 %v451, 4294901760
        %453 = vmatpush1.msra.mxu0 %v452
        %454 = vmatprep.subr.mxu0 0.0
        %455 = vmatpush1.msra.mxu0 0.0
        %456 = vmatprep.subr.mxu0 0.0
        %457 = vmatpush1.msra.mxu0 0.0
        %458 = vmatprep.subr.mxu0 0.0
        %459 = vmatpush1.msra.mxu0 0.0
        %460 = vmatprep.subr.mxu0 0.0
        %461 = vmatpush1.msra.mxu0 0.0
        %462 = vmatprep.subr.mxu0 0.0
        %463 = vmatpush1.msra.mxu0 0.0
        %464 = vmatprep.subr.mxu0 0.0
        %465 = vmatpush1.msra.mxu0 0.0
        %466 = vmatprep.subr.mxu0 0.0
        %467 = vmatpush1.msra.mxu0 0.0
        %468 = vmatprep.subr.mxu0 0.0
        %469 = vmatpush1.msra.mxu0 0.0
        %470 = vmatprep.subr.mxu0 0.0
        %471 = vmatpush1.msra.mxu0 0.0
        %472 = vmatprep.subr.mxu0 0.0
        %473 = vmatpush1.msra.mxu0 0.0
        %474 = vmatprep.subr.mxu0 0.0
        %475 = vmatpush1.msra.mxu0 0.0
        %476 = vmatprep.subr.mxu0 0.0
        %477 = vmatpush1.msra.mxu0 0.0
        %478 = vmatprep.subr.mxu0 0.0
        %479 = vmatpush1.msra.mxu0 0.0
        %480 = vmatprep.subr.mxu0 0.0
        %481 = vmatpush1.msra.mxu0 0.0
        %482 = vmatprep.subr.mxu0 0.0
        %483 = vmatpush1.msra.mxu0 0.0
        %484 = vmatprep.subr.mxu0 0.0
        %485 = vmatpush1.msra.mxu0 0.0
        %486 = vmatprep.subr.mxu0 0.0
        %487 = vmatpush1.msra.mxu0 0.0
        %488 = vmatprep.subr.mxu0 0.0
        %489 = vmatpush1.msra.mxu0 0.0
        %490 = vmatprep.subr.mxu0 0.0
        %491 = vmatpush1.msra.mxu0 0.0
        %492 = vmatprep.subr.mxu0 0.0
        %493 = vmatpush1.msra.mxu0 0.0
        %494 = vmatprep.subr.mxu0 0.0
        %495 = vmatpush1.msra.mxu0 0.0
        %496 = vmatprep.subr.mxu0 0.0
        %497 = vmatpush1.msra.mxu0 0.0
        %498 = vmatprep.subr.mxu0 0.0
        %499 = vmatpush1.msra.mxu0 0.0
        %500 = vmatprep.subr.mxu0 0.0
        %501 = vmatpush1.msra.mxu0 0.0
        %502 = vmatprep.subr.mxu0 0.0
        %503 = vmatpush1.msra.mxu0 0.0
        %504 = vmatprep.subr.mxu0 0.0
        %505 = vmatpush1.msra.mxu0 0.0
        %506 = vmatprep.subr.mxu0 0.0
        %507 = vmatpush1.msra.mxu0 0.0
        %508 = vmatprep.subr.mxu0 0.0
        %509 = vmatpush1.msra.mxu0 0.0
        %510 = vmatprep.subr.mxu0 0.0
        %511 = vmatpush1.msra.mxu0 0.0
        %512 = vmatprep.subr.mxu0 0.0
        %513 = vmatpush1.msra.mxu0 0.0
        %514 = vmatprep.subr.mxu0 0.0
        %515 = vmatpush1.msra.mxu0 0.0
        %516 = vmatprep.mubr.f32.mxu0 0.0
        %v517 = vand.u32 %v315, 4294901760
        %518 = vmatmul.mubr.f32.gmra.mrb[0].mxu0 %v517
        %v519 = vpop.f32.mrb[0].mxu0
        %v520 = vadd.f32 %v405, %v519
        %v521 = vpop.f32.mrb[0].mxu0
        %v522 = vadd.f32 %v407, %v521
        %523 = vmatprep.mubr.f32.mxu0 0.0
        %v524 = vand.u32 %v318, 4294901760
        %525 = vmatmul.mubr.f32.gmra.mrb[0].mxu0 %v524
        %v526 = vpop.f32.mrb[0].mxu0
        %v527 = vadd.f32 %v416, %v526
        %v528 = vpop.f32.mrb[0].mxu0
        %v529 = vadd.f32 %v418, %v528
        %530 = vmatprep.mubr.f32.mxu0 0.0
        %v531 = vand.u32 %v321, 4294901760
        %532 = vmatmul.mubr.f32.gmra.mrb[0].mxu0 %v531
        %v533 = vpop.f32.mrb[0].mxu0
        %v534 = vadd.f32 %v427, %v533
        %v535 = vpop.f32.mrb[0].mxu0
        %v536 = vadd.f32 %v429, %v535
        %537 = vmatprep.mubr.f32.mxu0 0.0
        %v538 = vand.u32 %v324, 4294901760
        %539 = vmatmul.mubr.f32.gmra.mrb[0].mxu0 %v538
        %v540 = vpop.f32.mrb[0].mxu0
        %v541 = vadd.f32 %v438, %v540
        %v542 = vpop.f32.mrb[0].mxu0
        %v543 = vadd.f32 %v440, %v542
        %544 = vdwg.mxu0
        %v545 = vand.u32 %v329, 4294901760
        %v546 = vsub.f32 %v329, %v545
        %547 = vmatprep.subr.mxu0 %v546
        %v548 = vand.u32 %v327, 4294901760
        %v549 = vsub.f32 %v327, %v548
        %550 = vmatpush1.msra.mxu0 %v549
        %551 = vmatprep.subr.mxu0 0.0
        %552 = vmatpush1.msra.mxu0 0.0
        %553 = vmatprep.subr.mxu0 0.0
        %554 = vmatpush1.msra.mxu0 0.0
        %555 = vmatprep.subr.mxu0 0.0
        %556 = vmatpush1.msra.mxu0 0.0
        %557 = vmatprep.subr.mxu0 0.0
        %558 = vmatpush1.msra.mxu0 0.0
        %559 = vmatprep.subr.mxu0 0.0
        %560 = vmatpush1.msra.mxu0 0.0
        %561 = vmatprep.subr.mxu0 0.0
        %562 = vmatpush1.msra.mxu0 0.0
        %563 = vmatprep.subr.mxu0 0.0
        %564 = vmatpush1.msra.mxu0 0.0
        %565 = vmatprep.subr.mxu0 0.0
        %566 = vmatpush1.msra.mxu0 0.0
        %567 = vmatprep.subr.mxu0 0.0
        %568 = vmatpush1.msra.mxu0 0.0
        %569 = vmatprep.subr.mxu0 0.0
        %570 = vmatpush1.msra.mxu0 0.0
        %571 = vmatprep.subr.mxu0 0.0
        %572 = vmatpush1.msra.mxu0 0.0
        %573 = vmatprep.subr.mxu0 0.0
        %574 = vmatpush1.msra.mxu0 0.0
        %575 = vmatprep.subr.mxu0 0.0
        %576 = vmatpush1.msra.mxu0 0.0
        %577 = vmatprep.subr.mxu0 0.0
        %578 = vmatpush1.msra.mxu0 0.0
        %579 = vmatprep.subr.mxu0 0.0
        %580 = vmatpush1.msra.mxu0 0.0
        %581 = vmatprep.subr.mxu0 0.0
        %582 = vmatpush1.msra.mxu0 0.0
        %583 = vmatprep.subr.mxu0 0.0
        %584 = vmatpush1.msra.mxu0 0.0
        %585 = vmatprep.subr.mxu0 0.0
        %586 = vmatpush1.msra.mxu0 0.0
        %587 = vmatprep.subr.mxu0 0.0
        %588 = vmatpush1.msra.mxu0 0.0
        %589 = vmatprep.subr.mxu0 0.0
        %590 = vmatpush1.msra.mxu0 0.0
        %591 = vmatprep.subr.mxu0 0.0
        %592 = vmatpush1.msra.mxu0 0.0
        %593 = vmatprep.subr.mxu0 0.0
        %594 = vmatpush1.msra.mxu0 0.0
        %595 = vmatprep.subr.mxu0 0.0
        %596 = vmatpush1.msra.mxu0 0.0
        %597 = vmatprep.subr.mxu0 0.0
        %598 = vmatpush1.msra.mxu0 0.0
        %599 = vmatprep.subr.mxu0 0.0
        %600 = vmatpush1.msra.mxu0 0.0
        %601 = vmatprep.subr.mxu0 0.0
        %602 = vmatpush1.msra.mxu0 0.0
        %603 = vmatprep.subr.mxu0 0.0
        %604 = vmatpush1.msra.mxu0 0.0
        %605 = vmatprep.subr.mxu0 0.0
        %606 = vmatpush1.msra.mxu0 0.0
        %607 = vmatprep.subr.mxu0 0.0
        %608 = vmatpush1.msra.mxu0 0.0
        %609 = vmatprep.subr.mxu0 0.0
        %610 = vmatpush1.msra.mxu0 0.0
        %611 = vmatprep.subr.mxu0 0.0
        %612 = vmatpush1.msra.mxu0 0.0
        %613 = vmatprep.mubr.f32.mxu0 0.0
        %v614 = vand.u32 %v315, 4294901760
        %v615 = vsub.f32 %v315, %v614
        %616 = vmatmul.mubr.f32.gmra.mrb[0].mxu0 %v615
        %v617 = vpop.f32.mrb[0].mxu0
        %v618 = vadd.f32 %v520, %v617
        %v619 = vpop.f32.mrb[0].mxu0
        %v620 = vadd.f32 %v522, %v619
        %621 = vmatprep.mubr.f32.mxu0 0.0
        %v622 = vand.u32 %v318, 4294901760
        %v623 = vsub.f32 %v318, %v622
        %624 = vmatmul.mubr.f32.gmra.mrb[0].mxu0 %v623
        %v625 = vpop.f32.mrb[0].mxu0
        %v626 = vadd.f32 %v527, %v625
        %v627 = vpop.f32.mrb[0].mxu0
        %v628 = vadd.f32 %v529, %v627
        %629 = vmatprep.mubr.f32.mxu0 0.0
        %v630 = vand.u32 %v321, 4294901760
        %v631 = vsub.f32 %v321, %v630
        %632 = vmatmul.mubr.f32.gmra.mrb[0].mxu0 %v631
        %v633 = vpop.f32.mrb[0].mxu0
        %v634 = vadd.f32 %v534, %v633
        %v635 = vpop.f32.mrb[0].mxu0
        %v636 = vadd.f32 %v536, %v635
        %637 = vmatprep.mubr.f32.mxu0 0.0
        %v638 = vand.u32 %v324, 4294901760
        %v639 = vsub.f32 %v324, %v638
        %640 = vmatmul.mubr.f32.gmra.mrb[0].mxu0 %v639
        %v641 = vpop.f32.mrb[0].mxu0
        %v642 = vadd.f32 %v541, %v641
        %v643 = vpop.f32.mrb[0].mxu0
        %v644 = vadd.f32 %v543, %v643
        %645 = vdwg.mxu0
        %v646 = vand.u32 %v329, 4294901760
        %647 = vmatprep.subr.mxu0 %v646
        %v648 = vand.u32 %v327, 4294901760
        %649 = vmatpush1.msra.mxu0 %v648
        %650 = vmatprep.subr.mxu0 0.0
        %651 = vmatpush1.msra.mxu0 0.0
        %652 = vmatprep.subr.mxu0 0.0
        %653 = vmatpush1.msra.mxu0 0.0
        %654 = vmatprep.subr.mxu0 0.0
        %655 = vmatpush1.msra.mxu0 0.0
        %656 = vmatprep.subr.mxu0 0.0
        %657 = vmatpush1.msra.mxu0 0.0
        %658 = vmatprep.subr.mxu0 0.0
        %659 = vmatpush1.msra.mxu0 0.0
        %660 = vmatprep.subr.mxu0 0.0
        %661 = vmatpush1.msra.mxu0 0.0
        %662 = vmatprep.subr.mxu0 0.0
        %663 = vmatpush1.msra.mxu0 0.0
        %664 = vmatprep.subr.mxu0 0.0
        %665 = vmatpush1.msra.mxu0 0.0
        %666 = vmatprep.subr.mxu0 0.0
        %667 = vmatpush1.msra.mxu0 0.0
        %668 = vmatprep.subr.mxu0 0.0
        %669 = vmatpush1.msra.mxu0 0.0
        %670 = vmatprep.subr.mxu0 0.0
        %671 = vmatpush1.msra.mxu0 0.0
        %672 = vmatprep.subr.mxu0 0.0
        %673 = vmatpush1.msra.mxu0 0.0
        %674 = vmatprep.subr.mxu0 0.0
        %675 = vmatpush1.msra.mxu0 0.0
        %676 = vmatprep.subr.mxu0 0.0
        %677 = vmatpush1.msra.mxu0 0.0
        %678 = vmatprep.subr.mxu0 0.0
        %679 = vmatpush1.msra.mxu0 0.0
        %680 = vmatprep.subr.mxu0 0.0
        %681 = vmatpush1.msra.mxu0 0.0
        %682 = vmatprep.subr.mxu0 0.0
        %683 = vmatpush1.msra.mxu0 0.0
        %684 = vmatprep.subr.mxu0 0.0
        %685 = vmatpush1.msra.mxu0 0.0
        %686 = vmatprep.subr.mxu0 0.0
        %687 = vmatpush1.msra.mxu0 0.0
        %688 = vmatprep.subr.mxu0 0.0
        %689 = vmatpush1.msra.mxu0 0.0
        %690 = vmatprep.subr.mxu0 0.0
        %691 = vmatpush1.msra.mxu0 0.0
        %692 = vmatprep.subr.mxu0 0.0
        %693 = vmatpush1.msra.mxu0 0.0
        %694 = vmatprep.subr.mxu0 0.0
        %695 = vmatpush1.msra.mxu0 0.0
        %696 = vmatprep.subr.mxu0 0.0
        %697 = vmatpush1.msra.mxu0 0.0
        %698 = vmatprep.subr.mxu0 0.0
        %699 = vmatpush1.msra.mxu0 0.0
        %700 = vmatprep.subr.mxu0 0.0
        %701 = vmatpush1.msra.mxu0 0.0
        %702 = vmatprep.subr.mxu0 0.0
        %703 = vmatpush1.msra.mxu0 0.0
        %704 = vmatprep.subr.mxu0 0.0
        %705 = vmatpush1.msra.mxu0 0.0
        %706 = vmatprep.subr.mxu0 0.0
        %707 = vmatpush1.msra.mxu0 0.0
        %708 = vmatprep.subr.mxu0 0.0
        %709 = vmatpush1.msra.mxu0 0.0
        %710 = vmatprep.subr.mxu0 0.0
        %711 = vmatpush1.msra.mxu0 0.0
        %712 = vmatprep.mubr.f32.mxu0 0.0
        %v713 = vand.u32 %v315, 4294901760
        %v714 = vsub.f32 %v315, %v713
        %v715 = vand.u32 %v714, 4294901760
        %716 = vmatmul.mubr.f32.gmra.mrb[0].mxu0 %v715
        %v717 = vpop.f32.mrb[0].mxu0
        %v718 = vadd.f32 %v618, %v717
        %v719 = vpop.f32.mrb[0].mxu0
        %v720 = vadd.f32 %v620, %v719
        %721 = vmatprep.mubr.f32.mxu0 0.0
        %v722 = vand.u32 %v318, 4294901760
        %v723 = vsub.f32 %v318, %v722
        %v724 = vand.u32 %v723, 4294901760
        %725 = vmatmul.mubr.f32.gmra.mrb[0].mxu0 %v724
        %v726 = vpop.f32.mrb[0].mxu0
        %v727 = vadd.f32 %v626, %v726
        %v728 = vpop.f32.mrb[0].mxu0
        %v729 = vadd.f32 %v628, %v728
        %730 = vmatprep.mubr.f32.mxu0 0.0
        %v731 = vand.u32 %v321, 4294901760
        %v732 = vsub.f32 %v321, %v731
        %v733 = vand.u32 %v732, 4294901760
        %734 = vmatmul.mubr.f32.gmra.mrb[0].mxu0 %v733
        %v735 = vpop.f32.mrb[0].mxu0
        %v736 = vadd.f32 %v634, %v735
        %v737 = vpop.f32.mrb[0].mxu0
        %v738 = vadd.f32 %v636, %v737
        %739 = vmatprep.mubr.f32.mxu0 0.0
        %v740 = vand.u32 %v324, 4294901760
        %v741 = vsub.f32 %v324, %v740
        %v742 = vand.u32 %v741, 4294901760
        %743 = vmatmul.mubr.f32.gmra.mrb[0].mxu0 %v742
        %v744 = vpop.f32.mrb[0].mxu0
        %v745 = vadd.f32 %v642, %v744
        %v746 = vpop.f32.mrb[0].mxu0
        %v747 = vadd.f32 %v644, %v746
        %748 = vdwg.mxu0
        %v749 = vand.u32 %v329, 4294901760
        %v750 = vsub.f32 %v329, %v749
        %v751 = vand.u32 %v750, 4294901760
        %752 = vmatprep.subr.mxu0 %v751
        %v753 = vand.u32 %v327, 4294901760
        %v754 = vsub.f32 %v327, %v753
        %v755 = vand.u32 %v754, 4294901760
        %756 = vmatpush1.msra.mxu0 %v755
        %757 = vmatprep.subr.mxu0 0.0
        %758 = vmatpush1.msra.mxu0 0.0
        %759 = vmatprep.subr.mxu0 0.0
        %760 = vmatpush1.msra.mxu0 0.0
        %761 = vmatprep.subr.mxu0 0.0
        %762 = vmatpush1.msra.mxu0 0.0
        %763 = vmatprep.subr.mxu0 0.0
        %764 = vmatpush1.msra.mxu0 0.0
        %765 = vmatprep.subr.mxu0 0.0
        %766 = vmatpush1.msra.mxu0 0.0
        %767 = vmatprep.subr.mxu0 0.0
        %768 = vmatpush1.msra.mxu0 0.0
        %769 = vmatprep.subr.mxu0 0.0
        %770 = vmatpush1.msra.mxu0 0.0
        %771 = vmatprep.subr.mxu0 0.0
        %772 = vmatpush1.msra.mxu0 0.0
        %773 = vmatprep.subr.mxu0 0.0
        %774 = vmatpush1.msra.mxu0 0.0
        %775 = vmatprep.subr.mxu0 0.0
        %776 = vmatpush1.msra.mxu0 0.0
        %777 = vmatprep.subr.mxu0 0.0
        %778 = vmatpush1.msra.mxu0 0.0
        %779 = vmatprep.subr.mxu0 0.0
        %780 = vmatpush1.msra.mxu0 0.0
        %781 = vmatprep.subr.mxu0 0.0
        %782 = vmatpush1.msra.mxu0 0.0
        %783 = vmatprep.subr.mxu0 0.0
        %784 = vmatpush1.msra.mxu0 0.0
        %785 = vmatprep.subr.mxu0 0.0
        %786 = vmatpush1.msra.mxu0 0.0
        %787 = vmatprep.subr.mxu0 0.0
        %788 = vmatpush1.msra.mxu0 0.0
        %789 = vmatprep.subr.mxu0 0.0
        %790 = vmatpush1.msra.mxu0 0.0
        %791 = vmatprep.subr.mxu0 0.0
        %792 = vmatpush1.msra.mxu0 0.0
        %793 = vmatprep.subr.mxu0 0.0
        %794 = vmatpush1.msra.mxu0 0.0
        %795 = vmatprep.subr.mxu0 0.0
        %796 = vmatpush1.msra.mxu0 0.0
        %797 = vmatprep.subr.mxu0 0.0
        %798 = vmatpush1.msra.mxu0 0.0
        %799 = vmatprep.subr.mxu0 0.0
        %800 = vmatpush1.msra.mxu0 0.0
        %801 = vmatprep.subr.mxu0 0.0
        %802 = vmatpush1.msra.mxu0 0.0
        %803 = vmatprep.subr.mxu0 0.0
        %804 = vmatpush1.msra.mxu0 0.0
        %805 = vmatprep.subr.mxu0 0.0
        %806 = vmatpush1.msra.mxu0 0.0
        %807 = vmatprep.subr.mxu0 0.0
        %808 = vmatpush1.msra.mxu0 0.0
        %809 = vmatprep.subr.mxu0 0.0
        %810 = vmatpush1.msra.mxu0 0.0
        %811 = vmatprep.subr.mxu0 0.0
        %812 = vmatpush1.msra.mxu0 0.0
        %813 = vmatprep.subr.mxu0 0.0
        %814 = vmatpush1.msra.mxu0 0.0
        %815 = vmatprep.subr.mxu0 0.0
        %816 = vmatpush1.msra.mxu0 0.0
        %817 = vmatprep.subr.mxu0 0.0
        %818 = vmatpush1.msra.mxu0 0.0
        %819 = vmatprep.mubr.f32.mxu0 0.0
        %v820 = vand.u32 %v315, 4294901760
        %821 = vmatmul.mubr.f32.gmra.mrb[0].mxu0 %v820
        %v822 = vpop.f32.mrb[0].mxu0
        %v823 = vadd.f32 %v718, %v822
        %v824 = vpop.f32.mrb[0].mxu0
        %v825 = vadd.f32 %v720, %v824
        %826 = vmatprep.mubr.f32.mxu0 0.0
        %v827 = vand.u32 %v318, 4294901760
        %828 = vmatmul.mubr.f32.gmra.mrb[0].mxu0 %v827
        %v829 = vpop.f32.mrb[0].mxu0
        %v830 = vadd.f32 %v727, %v829
        %v831 = vpop.f32.mrb[0].mxu0
        %v832 = vadd.f32 %v729, %v831
        %833 = vmatprep.mubr.f32.mxu0 0.0
        %v834 = vand.u32 %v321, 4294901760
        %835 = vmatmul.mubr.f32.gmra.mrb[0].mxu0 %v834
        %v836 = vpop.f32.mrb[0].mxu0
        %v837 = vadd.f32 %v736, %v836
        %v838 = vpop.f32.mrb[0].mxu0
        %v839 = vadd.f32 %v738, %v838
        %840 = vmatprep.mubr.f32.mxu0 0.0
        %v841 = vand.u32 %v324, 4294901760
        %842 = vmatmul.mubr.f32.gmra.mrb[0].mxu0 %v841
        %v843 = vpop.f32.mrb[0].mxu0
        %v844 = vadd.f32 %v745, %v843
        %v845 = vpop.f32.mrb[0].mxu0
        %v846 = vadd.f32 %v747, %v845
        %847 = vdwg.mxu0
        %v848 = vand.u32 %v329, 4294901760
        %849 = vmatprep.subr.mxu0 %v848
        %v850 = vand.u32 %v327, 4294901760
        %851 = vmatpush1.msra.mxu0 %v850
        %852 = vmatprep.subr.mxu0 0.0
        %853 = vmatpush1.msra.mxu0 0.0
        %854 = vmatprep.subr.mxu0 0.0
        %855 = vmatpush1.msra.mxu0 0.0
        %856 = vmatprep.subr.mxu0 0.0
        %857 = vmatpush1.msra.mxu0 0.0
        %858 = vmatprep.subr.mxu0 0.0
        %859 = vmatpush1.msra.mxu0 0.0
        %860 = vmatprep.subr.mxu0 0.0
        %861 = vmatpush1.msra.mxu0 0.0
        %862 = vmatprep.subr.mxu0 0.0
        %863 = vmatpush1.msra.mxu0 0.0
        %864 = vmatprep.subr.mxu0 0.0
        %865 = vmatpush1.msra.mxu0 0.0
        %866 = vmatprep.subr.mxu0 0.0
        %867 = vmatpush1.msra.mxu0 0.0
        %868 = vmatprep.subr.mxu0 0.0
        %869 = vmatpush1.msra.mxu0 0.0
        %870 = vmatprep.subr.mxu0 0.0
        %871 = vmatpush1.msra.mxu0 0.0
        %872 = vmatprep.subr.mxu0 0.0
        %873 = vmatpush1.msra.mxu0 0.0
        %874 = vmatprep.subr.mxu0 0.0
        %875 = vmatpush1.msra.mxu0 0.0
        %876 = vmatprep.subr.mxu0 0.0
        %877 = vmatpush1.msra.mxu0 0.0
        %878 = vmatprep.subr.mxu0 0.0
        %879 = vmatpush1.msra.mxu0 0.0
        %880 = vmatprep.subr.mxu0 0.0
        %881 = vmatpush1.msra.mxu0 0.0
        %882 = vmatprep.subr.mxu0 0.0
        %883 = vmatpush1.msra.mxu0 0.0
        %884 = vmatprep.subr.mxu0 0.0
        %885 = vmatpush1.msra.mxu0 0.0
        %886 = vmatprep.subr.mxu0 0.0
        %887 = vmatpush1.msra.mxu0 0.0
        %888 = vmatprep.subr.mxu0 0.0
        %889 = vmatpush1.msra.mxu0 0.0
        %890 = vmatprep.subr.mxu0 0.0
        %891 = vmatpush1.msra.mxu0 0.0
        %892 = vmatprep.subr.mxu0 0.0
        %893 = vmatpush1.msra.mxu0 0.0
        %894 = vmatprep.subr.mxu0 0.0
        %895 = vmatpush1.msra.mxu0 0.0
        %896 = vmatprep.subr.mxu0 0.0
        %897 = vmatpush1.msra.mxu0 0.0
        %898 = vmatprep.subr.mxu0 0.0
        %899 = vmatpush1.msra.mxu0 0.0
        %900 = vmatprep.subr.mxu0 0.0
        %901 = vmatpush1.msra.mxu0 0.0
        %902 = vmatprep.subr.mxu0 0.0
        %903 = vmatpush1.msra.mxu0 0.0
        %904 = vmatprep.subr.mxu0 0.0
        %905 = vmatpush1.msra.mxu0 0.0
        %906 = vmatprep.subr.mxu0 0.0
        %907 = vmatpush1.msra.mxu0 0.0
        %908 = vmatprep.subr.mxu0 0.0
        %909 = vmatpush1.msra.mxu0 0.0
        %910 = vmatprep.subr.mxu0 0.0
        %911 = vmatpush1.msra.mxu0 0.0
        %912 = vmatprep.subr.mxu0 0.0
        %913 = vmatpush1.msra.mxu0 0.0
        %914 = vmatprep.mubr.f32.mxu0 0.0
        %v915 = vand.u32 %v315, 4294901760
        %916 = vmatmul.mubr.f32.gmra.mrb[0].mxu0 %v915
        %v917 = vpop.f32.mrb[0].mxu0
        %v918 = vadd.f32 %v823, %v917
        %v919 = vpop.f32.mrb[0].mxu0
        %v920 = vadd.f32 %v825, %v919
        %921 = vmatprep.mubr.f32.mxu0 0.0
        %v922 = vand.u32 %v318, 4294901760
        %923 = vmatmul.mubr.f32.gmra.mrb[0].mxu0 %v922
        %v924 = vpop.f32.mrb[0].mxu0
        %v925 = vadd.f32 %v830, %v924
        %v926 = vpop.f32.mrb[0].mxu0
        %v927 = vadd.f32 %v832, %v926
        %928 = vmatprep.mubr.f32.mxu0 0.0
        %v929 = vand.u32 %v321, 4294901760
        %930 = vmatmul.mubr.f32.gmra.mrb[0].mxu0 %v929
        %v931 = vpop.f32.mrb[0].mxu0
        %v932 = vadd.f32 %v837, %v931
        %v933 = vpop.f32.mrb[0].mxu0
        %v934 = vadd.f32 %v839, %v933
        %935 = vmatprep.mubr.f32.mxu0 0.0
        %v936 = vand.u32 %v324, 4294901760
        %937 = vmatmul.mubr.f32.gmra.mrb[0].mxu0 %v936
        %v938 = vpop.f32.mrb[0].mxu0
        %v939 = vadd.f32 %v844, %v938
        %v940 = vpop.f32.mrb[0].mxu0
        %v941 = vadd.f32 %v846, %v940
        %942 = vdwg.mxu0
        %v943 = vtanh.pop %v918
        %v944 = vtanh.pop %v920
        %v945 = vtanh.pop %v925
        %v946 = vtanh.pop %v927
        %v947 = vtanh.pop %v932
        %v948 = vtanh.pop %v934
        %v949 = vtanh.pop %v939
        %v950 = vtanh.pop %v941
        %v951 = vld [vmem:[%s3] sm:$0xff]
        %v952 = vld [vmem:[%s3 + $0x8] sm:$0xff]
        %v953 = vld [vmem:[%s3 + $0x10] sm:$0xff]
        %v954 = vld [vmem:[%s3 + $0x18] sm:$0xff]
        %v955 = vld [vmem:[%s4] sm:$0xff]
        %v956 = vld [vmem:[%s4 + $0x8] sm:$0xff]
        %v957 = vld [vmem:[%s4 + $0x10] sm:$0xff]
        %v958 = vld [vmem:[%s4 + $0x18] sm:$0xff]
        %960 = vset.pattern.permute.xlu0 0
        %961 = vperm.xlu0 %960, %v955
        %v962 = vpop.permute.xlu0 %961
        %965 = vset.pattern.permute.xlu0 0
        %966 = vperm.xlu0 %965, %v956
        %v967 = vpop.permute.xlu0 %966
        %970 = vset.pattern.permute.xlu0 0
        %971 = vperm.xlu0 %970, %v957
        %v972 = vpop.permute.xlu0 %971
        %975 = vset.pattern.permute.xlu0 0
        %976 = vperm.xlu0 %975, %v958
        %v977 = vpop.permute.xlu0 %976
        %vm979 = vcmask 261120
        %v981 = vsel %vm979, %v951, 0
        %v984 = vsel %vm979, %v952, 0
        %v987 = vsel %vm979, %v953, 0
        %v990 = vsel %vm979, %v954, 0
        %v992 = vand.u32 %v944, 4294901760
        %993 = vmatprep.subr.mxu0 %v992
        %v994 = vand.u32 %v943, 4294901760
        %995 = vmatpush1.msra.mxu0 %v994
        %v996 = vand.u32 %v946, 4294901760
        %997 = vmatprep.subr.mxu0 %v996
        %v998 = vand.u32 %v945, 4294901760
        %999 = vmatpush1.msra.mxu0 %v998
        %v1000 = vand.u32 %v948, 4294901760
        %1001 = vmatprep.subr.mxu0 %v1000
        %v1002 = vand.u32 %v947, 4294901760
        %1003 = vmatpush1.msra.mxu0 %v1002
        %v1004 = vand.u32 %v950, 4294901760
        %1005 = vmatprep.subr.mxu0 %v1004
        %v1006 = vand.u32 %v949, 4294901760
        %1007 = vmatpush1.msra.mxu0 %v1006
        %1008 = vmatprep.subr.mxu0 0.0
        %1009 = vmatpush1.msra.mxu0 0.0
        %1010 = vmatprep.subr.mxu0 0.0
        %1011 = vmatpush1.msra.mxu0 0.0
        %1012 = vmatprep.subr.mxu0 0.0
        %1013 = vmatpush1.msra.mxu0 0.0
        %1014 = vmatprep.subr.mxu0 0.0
        %1015 = vmatpush1.msra.mxu0 0.0
        %1016 = vmatprep.subr.mxu0 0.0
        %1017 = vmatpush1.msra.mxu0 0.0
        %1018 = vmatprep.subr.mxu0 0.0
        %1019 = vmatpush1.msra.mxu0 0.0
        %1020 = vmatprep.subr.mxu0 0.0
        %1021 = vmatpush1.msra.mxu0 0.0
        %1022 = vmatprep.subr.mxu0 0.0
        %1023 = vmatpush1.msra.mxu0 0.0
        %1024 = vmatprep.subr.mxu0 0.0
        %1025 = vmatpush1.msra.mxu0 0.0
        %1026 = vmatprep.subr.mxu0 0.0
        %1027 = vmatpush1.msra.mxu0 0.0
        %1028 = vmatprep.subr.mxu0 0.0
        %1029 = vmatpush1.msra.mxu0 0.0
        %1030 = vmatprep.subr.mxu0 0.0
        %1031 = vmatpush1.msra.mxu0 0.0
        %1032 = vmatprep.subr.mxu0 0.0
        %1033 = vmatpush1.msra.mxu0 0.0
        %1034 = vmatprep.subr.mxu0 0.0
        %1035 = vmatpush1.msra.mxu0 0.0
        %1036 = vmatprep.subr.mxu0 0.0
        %1037 = vmatpush1.msra.mxu0 0.0
        %1038 = vmatprep.subr.mxu0 0.0
        %1039 = vmatpush1.msra.mxu0 0.0
        %1040 = vmatprep.subr.mxu0 0.0
        %1041 = vmatpush1.msra.mxu0 0.0
        %1042 = vmatprep.subr.mxu0 0.0
        %1043 = vmatpush1.msra.mxu0 0.0
        %1044 = vmatprep.subr.mxu0 0.0
        %1045 = vmatpush1.msra.mxu0 0.0
        %1046 = vmatprep.subr.mxu0 0.0
        %1047 = vmatpush1.msra.mxu0 0.0
        %1048 = vmatprep.subr.mxu0 0.0
        %1049 = vmatpush1.msra.mxu0 0.0
        %1050 = vmatprep.subr.mxu0 0.0
        %1051 = vmatpush1.msra.mxu0 0.0
        %1052 = vmatprep.subr.mxu0 0.0
        %1053 = vmatpush1.msra.mxu0 0.0
        %1054 = vmatprep.subr.mxu0 0.0
        %1055 = vmatpush1.msra.mxu0 0.0
        %1056 = vmatprep.subr.mxu0 0.0
        %1057 = vmatpush1.msra.mxu0 0.0
        %1058 = vmatprep.subr.mxu0 0.0
        %1059 = vmatpush1.msra.mxu0 0.0
        %1060 = vmatprep.subr.mxu0 0.0
        %1061 = vmatpush1.msra.mxu0 0.0
        %1062 = vmatprep.subr.mxu0 0.0
        %1063 = vmatpush1.msra.mxu0 0.0
        %1064 = vmatprep.mubr.f32.mxu0 0.0
        %v1065 = vand.u32 %v981, 4294901760
        %v1066 = vsub.f32 %v981, %v1065
        %v1067 = vand.u32 %v1066, 4294901760
        %v1068 = vsub.f32 %v1066, %v1067
        %v1069 = vand.u32 %v1068, 4294901760
        %1070 = vmatmul.mubr.f32.gmra.mrb[0].mxu0 %v1069
        %v1071 = vpop.f32.mrb[0].mxu0
        %v1072 = vadd.f32 %v962, %v1071
        %v1073 = vpop.f32.mrb[0].mxu0
        %v1074 = vadd.f32 %v962, %v1073
        %1075 = vmatprep.mubr.f32.mxu0 0.0
        %v1076 = vand.u32 %v984, 4294901760
        %v1077 = vsub.f32 %v984, %v1076
        %v1078 = vand.u32 %v1077, 4294901760
        %v1079 = vsub.f32 %v1077, %v1078
        %v1080 = vand.u32 %v1079, 4294901760
        %1081 = vmatmul.mubr.f32.gmra.mrb[0].mxu0 %v1080
        %v1082 = vpop.f32.mrb[0].mxu0
        %v1083 = vadd.f32 %v967, %v1082
        %v1084 = vpop.f32.mrb[0].mxu0
        %v1085 = vadd.f32 %v967, %v1084
        %1086 = vmatprep.mubr.f32.mxu0 0.0
        %v1087 = vand.u32 %v987, 4294901760
        %v1088 = vsub.f32 %v987, %v1087
        %v1089 = vand.u32 %v1088, 4294901760
        %v1090 = vsub.f32 %v1088, %v1089
        %v1091 = vand.u32 %v1090, 4294901760
        %1092 = vmatmul.mubr.f32.gmra.mrb[0].mxu0 %v1091
        %v1093 = vpop.f32.mrb[0].mxu0
        %v1094 = vadd.f32 %v972, %v1093
        %v1095 = vpop.f32.mrb[0].mxu0
        %v1096 = vadd.f32 %v972, %v1095
        %1097 = vmatprep.mubr.f32.mxu0 0.0
        %v1098 = vand.u32 %v990, 4294901760
        %v1099 = vsub.f32 %v990, %v1098
        %v1100 = vand.u32 %v1099, 4294901760
        %v1101 = vsub.f32 %v1099, %v1100
        %v1102 = vand.u32 %v1101, 4294901760
        %1103 = vmatmul.mubr.f32.gmra.mrb[0].mxu0 %v1102
        %v1104 = vpop.f32.mrb[0].mxu0
        %v1105 = vadd.f32 %v977, %v1104
        %v1106 = vpop.f32.mrb[0].mxu0
        %v1107 = vadd.f32 %v977, %v1106
        %1108 = vdwg.mxu0
        %v1109 = vand.u32 %v944, 4294901760
        %v1110 = vsub.f32 %v944, %v1109
        %v1111 = vand.u32 %v1110, 4294901760
        %v1112 = vsub.f32 %v1110, %v1111
        %v1113 = vand.u32 %v1112, 4294901760
        %1114 = vmatprep.subr.mxu0 %v1113
        %v1115 = vand.u32 %v943, 4294901760
        %v1116 = vsub.f32 %v943, %v1115
        %v1117 = vand.u32 %v1116, 4294901760
        %v1118 = vsub.f32 %v1116, %v1117
        %v1119 = vand.u32 %v1118, 4294901760
        %1120 = vmatpush1.msra.mxu0 %v1119
        %v1121 = vand.u32 %v946, 4294901760
        %v1122 = vsub.f32 %v946, %v1121
        %v1123 = vand.u32 %v1122, 4294901760
        %v1124 = vsub.f32 %v1122, %v1123
        %v1125 = vand.u32 %v1124, 4294901760
        %1126 = vmatprep.subr.mxu0 %v1125
        %v1127 = vand.u32 %v945, 4294901760
        %v1128 = vsub.f32 %v945, %v1127
        %v1129 = vand.u32 %v1128, 4294901760
        %v1130 = vsub.f32 %v1128, %v1129
        %v1131 = vand.u32 %v1130, 4294901760
        %1132 = vmatpush1.msra.mxu0 %v1131
        %v1133 = vand.u32 %v948, 4294901760
        %v1134 = vsub.f32 %v948, %v1133
        %v1135 = vand.u32 %v1134, 4294901760
        %v1136 = vsub.f32 %v1134, %v1135
        %v1137 = vand.u32 %v1136, 4294901760
        %1138 = vmatprep.subr.mxu0 %v1137
        %v1139 = vand.u32 %v947, 4294901760
        %v1140 = vsub.f32 %v947, %v1139
        %v1141 = vand.u32 %v1140, 4294901760
        %v1142 = vsub.f32 %v1140, %v1141
        %v1143 = vand.u32 %v1142, 4294901760
        %1144 = vmatpush1.msra.mxu0 %v1143
        %v1145 = vand.u32 %v950, 4294901760
        %v1146 = vsub.f32 %v950, %v1145
        %v1147 = vand.u32 %v1146, 4294901760
        %v1148 = vsub.f32 %v1146, %v1147
        %v1149 = vand.u32 %v1148, 4294901760
        %1150 = vmatprep.subr.mxu0 %v1149
        %v1151 = vand.u32 %v949, 4294901760
        %v1152 = vsub.f32 %v949, %v1151
        %v1153 = vand.u32 %v1152, 4294901760
        %v1154 = vsub.f32 %v1152, %v1153
        %v1155 = vand.u32 %v1154, 4294901760
        %1156 = vmatpush1.msra.mxu0 %v1155
        %1157 = vmatprep.subr.mxu0 0.0
        %1158 = vmatpush1.msra.mxu0 0.0
        %1159 = vmatprep.subr.mxu0 0.0
        %1160 = vmatpush1.msra.mxu0 0.0
        %1161 = vmatprep.subr.mxu0 0.0
        %1162 = vmatpush1.msra.mxu0 0.0
        %1163 = vmatprep.subr.mxu0 0.0
        %1164 = vmatpush1.msra.mxu0 0.0
        %1165 = vmatprep.subr.mxu0 0.0
        %1166 = vmatpush1.msra.mxu0 0.0
        %1167 = vmatprep.subr.mxu0 0.0
        %1168 = vmatpush1.msra.mxu0 0.0
        %1169 = vmatprep.subr.mxu0 0.0
        %1170 = vmatpush1.msra.mxu0 0.0
        %1171 = vmatprep.subr.mxu0 0.0
        %1172 = vmatpush1.msra.mxu0 0.0
        %1173 = vmatprep.subr.mxu0 0.0
        %1174 = vmatpush1.msra.mxu0 0.0
        %1175 = vmatprep.subr.mxu0 0.0
        %1176 = vmatpush1.msra.mxu0 0.0
        %1177 = vmatprep.subr.mxu0 0.0
        %1178 = vmatpush1.msra.mxu0 0.0
        %1179 = vmatprep.subr.mxu0 0.0
        %1180 = vmatpush1.msra.mxu0 0.0
        %1181 = vmatprep.subr.mxu0 0.0
        %1182 = vmatpush1.msra.mxu0 0.0
        %1183 = vmatprep.subr.mxu0 0.0
        %1184 = vmatpush1.msra.mxu0 0.0
        %1185 = vmatprep.subr.mxu0 0.0
        %1186 = vmatpush1.msra.mxu0 0.0
        %1187 = vmatprep.subr.mxu0 0.0
        %1188 = vmatpush1.msra.mxu0 0.0
        %1189 = vmatprep.subr.mxu0 0.0
        %1190 = vmatpush1.msra.mxu0 0.0
        %1191 = vmatprep.subr.mxu0 0.0
        %1192 = vmatpush1.msra.mxu0 0.0
        %1193 = vmatprep.subr.mxu0 0.0
        %1194 = vmatpush1.msra.mxu0 0.0
        %1195 = vmatprep.subr.mxu0 0.0
        %1196 = vmatpush1.msra.mxu0 0.0
        %1197 = vmatprep.subr.mxu0 0.0
        %1198 = vmatpush1.msra.mxu0 0.0
        %1199 = vmatprep.subr.mxu0 0.0
        %1200 = vmatpush1.msra.mxu0 0.0
        %1201 = vmatprep.subr.mxu0 0.0
        %1202 = vmatpush1.msra.mxu0 0.0
        %1203 = vmatprep.subr.mxu0 0.0
        %1204 = vmatpush1.msra.mxu0 0.0
        %1205 = vmatprep.subr.mxu0 0.0
        %1206 = vmatpush1.msra.mxu0 0.0
        %1207 = vmatprep.subr.mxu0 0.0
        %1208 = vmatpush1.msra.mxu0 0.0
        %1209 = vmatprep.subr.mxu0 0.0
        %1210 = vmatpush1.msra.mxu0 0.0
        %1211 = vmatprep.subr.mxu0 0.0
        %1212 = vmatpush1.msra.mxu0 0.0
        %1213 = vmatprep.mubr.f32.mxu0 0.0
        %v1214 = vand.u32 %v981, 4294901760
        %1215 = vmatmul.mubr.f32.gmra.mrb[0].mxu0 %v1214
        %v1216 = vpop.f32.mrb[0].mxu0
        %v1217 = vadd.f32 %v1072, %v1216
        %v1218 = vpop.f32.mrb[0].mxu0
        %v1219 = vadd.f32 %v1074, %v1218
        %1220 = vmatprep.mubr.f32.mxu0 0.0
        %v1221 = vand.u32 %v984, 4294901760
        %1222 = vmatmul.mubr.f32.gmra.mrb[0].mxu0 %v1221
        %v1223 = vpop.f32.mrb[0].mxu0
        %v1224 = vadd.f32 %v1083, %v1223
        %v1225 = vpop.f32.mrb[0].mxu0
        %v1226 = vadd.f32 %v1085, %v1225
        %1227 = vmatprep.mubr.f32.mxu0 0.0
        %v1228 = vand.u32 %v987, 4294901760
        %1229 = vmatmul.mubr.f32.gmra.mrb[0].mxu0 %v1228
        %v1230 = vpop.f32.mrb[0].mxu0
        %v1231 = vadd.f32 %v1094, %v1230
        %v1232 = vpop.f32.mrb[0].mxu0
        %v1233 = vadd.f32 %v1096, %v1232
        %1234 = vmatprep.mubr.f32.mxu0 0.0
        %v1235 = vand.u32 %v990, 4294901760
        %1236 = vmatmul.mubr.f32.gmra.mrb[0].mxu0 %v1235
        %v1237 = vpop.f32.mrb[0].mxu0
        %v1238 = vadd.f32 %v1105, %v1237
        %v1239 = vpop.f32.mrb[0].mxu0
        %v1240 = vadd.f32 %v1107, %v1239
        %1241 = vdwg.mxu0
        %v1242 = vand.u32 %v944, 4294901760
        %v1243 = vsub.f32 %v944, %v1242
        %1244 = vmatprep.subr.mxu0 %v1243
        %v1245 = vand.u32 %v943, 4294901760
        %v1246 = vsub.f32 %v943, %v1245
        %1247 = vmatpush1.msra.mxu0 %v1246
        %v1248 = vand.u32 %v946, 4294901760
        %v1249 = vsub.f32 %v946, %v1248
        %1250 = vmatprep.subr.mxu0 %v1249
        %v1251 = vand.u32 %v945, 4294901760
        %v1252 = vsub.f32 %v945, %v1251
        %1253 = vmatpush1.msra.mxu0 %v1252
        %v1254 = vand.u32 %v948, 4294901760
        %v1255 = vsub.f32 %v948, %v1254
        %1256 = vmatprep.subr.mxu0 %v1255
        %v1257 = vand.u32 %v947, 4294901760
        %v1258 = vsub.f32 %v947, %v1257
        %1259 = vmatpush1.msra.mxu0 %v1258
        %v1260 = vand.u32 %v950, 4294901760
        %v1261 = vsub.f32 %v950, %v1260
        %1262 = vmatprep.subr.mxu0 %v1261
        %v1263 = vand.u32 %v949, 4294901760
        %v1264 = vsub.f32 %v949, %v1263
        %1265 = vmatpush1.msra.mxu0 %v1264
        %1266 = vmatprep.subr.mxu0 0.0
        %1267 = vmatpush1.msra.mxu0 0.0
        %1268 = vmatprep.subr.mxu0 0.0
        %1269 = vmatpush1.msra.mxu0 0.0
        %1270 = vmatprep.subr.mxu0 0.0
        %1271 = vmatpush1.msra.mxu0 0.0
        %1272 = vmatprep.subr.mxu0 0.0
        %1273 = vmatpush1.msra.mxu0 0.0
        %1274 = vmatprep.subr.mxu0 0.0
        %1275 = vmatpush1.msra.mxu0 0.0
        %1276 = vmatprep.subr.mxu0 0.0
        %1277 = vmatpush1.msra.mxu0 0.0
        %1278 = vmatprep.subr.mxu0 0.0
        %1279 = vmatpush1.msra.mxu0 0.0
        %1280 = vmatprep.subr.mxu0 0.0
        %1281 = vmatpush1.msra.mxu0 0.0
        %1282 = vmatprep.subr.mxu0 0.0
        %1283 = vmatpush1.msra.mxu0 0.0
        %1284 = vmatprep.subr.mxu0 0.0
        %1285 = vmatpush1.msra.mxu0 0.0
        %1286 = vmatprep.subr.mxu0 0.0
        %1287 = vmatpush1.msra.mxu0 0.0
        %1288 = vmatprep.subr.mxu0 0.0
        %1289 = vmatpush1.msra.mxu0 0.0
        %1290 = vmatprep.subr.mxu0 0.0
        %1291 = vmatpush1.msra.mxu0 0.0
        %1292 = vmatprep.subr.mxu0 0.0
        %1293 = vmatpush1.msra.mxu0 0.0
        %1294 = vmatprep.subr.mxu0 0.0
        %1295 = vmatpush1.msra.mxu0 0.0
        %1296 = vmatprep.subr.mxu0 0.0
        %1297 = vmatpush1.msra.mxu0 0.0
        %1298 = vmatprep.subr.mxu0 0.0
        %1299 = vmatpush1.msra.mxu0 0.0
        %1300 = vmatprep.subr.mxu0 0.0
        %1301 = vmatpush1.msra.mxu0 0.0
        %1302 = vmatprep.subr.mxu0 0.0
        %1303 = vmatpush1.msra.mxu0 0.0
        %1304 = vmatprep.subr.mxu0 0.0
        %1305 = vmatpush1.msra.mxu0 0.0
        %1306 = vmatprep.subr.mxu0 0.0
        %1307 = vmatpush1.msra.mxu0 0.0
        %1308 = vmatprep.subr.mxu0 0.0
        %1309 = vmatpush1.msra.mxu0 0.0
        %1310 = vmatprep.subr.mxu0 0.0
        %1311 = vmatpush1.msra.mxu0 0.0
        %1312 = vmatprep.subr.mxu0 0.0
        %1313 = vmatpush1.msra.mxu0 0.0
        %1314 = vmatprep.subr.mxu0 0.0
        %1315 = vmatpush1.msra.mxu0 0.0
        %1316 = vmatprep.subr.mxu0 0.0
        %1317 = vmatpush1.msra.mxu0 0.0
        %1318 = vmatprep.subr.mxu0 0.0
        %1319 = vmatpush1.msra.mxu0 0.0
        %1320 = vmatprep.subr.mxu0 0.0
        %1321 = vmatpush1.msra.mxu0 0.0
        %1322 = vmatprep.mubr.f32.mxu0 0.0
        %v1323 = vand.u32 %v981, 4294901760
        %v1324 = vsub.f32 %v981, %v1323
        %1325 = vmatmul.mubr.f32.gmra.mrb[0].mxu0 %v1324
        %v1326 = vpop.f32.mrb[0].mxu0
        %v1327 = vadd.f32 %v1217, %v1326
        %v1328 = vpop.f32.mrb[0].mxu0
        %v1329 = vadd.f32 %v1219, %v1328
        %1330 = vmatprep.mubr.f32.mxu0 0.0
        %v1331 = vand.u32 %v984, 4294901760
        %v1332 = vsub.f32 %v984, %v1331
        %1333 = vmatmul.mubr.f32.gmra.mrb[0].mxu0 %v1332
        %v1334 = vpop.f32.mrb[0].mxu0
        %v1335 = vadd.f32 %v1224, %v1334
        %v1336 = vpop.f32.mrb[0].mxu0
        %v1337 = vadd.f32 %v1226, %v1336
        %1338 = vmatprep.mubr.f32.mxu0 0.0
        %v1339 = vand.u32 %v987, 4294901760
        %v1340 = vsub.f32 %v987, %v1339
        %1341 = vmatmul.mubr.f32.gmra.mrb[0].mxu0 %v1340
        %v1342 = vpop.f32.mrb[0].mxu0
        %v1343 = vadd.f32 %v1231, %v1342
        %v1344 = vpop.f32.mrb[0].mxu0
        %v1345 = vadd.f32 %v1233, %v1344
        %1346 = vmatprep.mubr.f32.mxu0 0.0
        %v1347 = vand.u32 %v990, 4294901760
        %v1348 = vsub.f32 %v990, %v1347
        %1349 = vmatmul.mubr.f32.gmra.mrb[0].mxu0 %v1348
        %v1350 = vpop.f32.mrb[0].mxu0
        %v1351 = vadd.f32 %v1238, %v1350
        %v1352 = vpop.f32.mrb[0].mxu0
        %v1353 = vadd.f32 %v1240, %v1352
        %1354 = vdwg.mxu0
        %v1355 = vand.u32 %v944, 4294901760
        %1356 = vmatprep.subr.mxu0 %v1355
        %v1357 = vand.u32 %v943, 4294901760
        %1358 = vmatpush1.msra.mxu0 %v1357
        %v1359 = vand.u32 %v946, 4294901760
        %1360 = vmatprep.subr.mxu0 %v1359
        %v1361 = vand.u32 %v945, 4294901760
        %1362 = vmatpush1.msra.mxu0 %v1361
        %v1363 = vand.u32 %v948, 4294901760
        %1364 = vmatprep.subr.mxu0 %v1363
        %v1365 = vand.u32 %v947, 4294901760
        %1366 = vmatpush1.msra.mxu0 %v1365
        %v1367 = vand.u32 %v950, 4294901760
        %1368 = vmatprep.subr.mxu0 %v1367
        %v1369 = vand.u32 %v949, 4294901760
        %1370 = vmatpush1.msra.mxu0 %v1369
        %1371 = vmatprep.subr.mxu0 0.0
        %1372 = vmatpush1.msra.mxu0 0.0
        %1373 = vmatprep.subr.mxu0 0.0
        %1374 = vmatpush1.msra.mxu0 0.0
        %1375 = vmatprep.subr.mxu0 0.0
        %1376 = vmatpush1.msra.mxu0 0.0
        %1377 = vmatprep.subr.mxu0 0.0
        %1378 = vmatpush1.msra.mxu0 0.0
        %1379 = vmatprep.subr.mxu0 0.0
        %1380 = vmatpush1.msra.mxu0 0.0
        %1381 = vmatprep.subr.mxu0 0.0
        %1382 = vmatpush1.msra.mxu0 0.0
        %1383 = vmatprep.subr.mxu0 0.0
        %1384 = vmatpush1.msra.mxu0 0.0
        %1385 = vmatprep.subr.mxu0 0.0
        %1386 = vmatpush1.msra.mxu0 0.0
        %1387 = vmatprep.subr.mxu0 0.0
        %1388 = vmatpush1.msra.mxu0 0.0
        %1389 = vmatprep.subr.mxu0 0.0
        %1390 = vmatpush1.msra.mxu0 0.0
        %1391 = vmatprep.subr.mxu0 0.0
        %1392 = vmatpush1.msra.mxu0 0.0
        %1393 = vmatprep.subr.mxu0 0.0
        %1394 = vmatpush1.msra.mxu0 0.0
        %1395 = vmatprep.subr.mxu0 0.0
        %1396 = vmatpush1.msra.mxu0 0.0
        %1397 = vmatprep.subr.mxu0 0.0
        %1398 = vmatpush1.msra.mxu0 0.0
        %1399 = vmatprep.subr.mxu0 0.0
        %1400 = vmatpush1.msra.mxu0 0.0
        %1401 = vmatprep.subr.mxu0 0.0
        %1402 = vmatpush1.msra.mxu0 0.0
        %1403 = vmatprep.subr.mxu0 0.0
        %1404 = vmatpush1.msra.mxu0 0.0
        %1405 = vmatprep.subr.mxu0 0.0
        %1406 = vmatpush1.msra.mxu0 0.0
        %1407 = vmatprep.subr.mxu0 0.0
        %1408 = vmatpush1.msra.mxu0 0.0
        %1409 = vmatprep.subr.mxu0 0.0
        %1410 = vmatpush1.msra.mxu0 0.0
        %1411 = vmatprep.subr.mxu0 0.0
        %1412 = vmatpush1.msra.mxu0 0.0
        %1413 = vmatprep.subr.mxu0 0.0
        %1414 = vmatpush1.msra.mxu0 0.0
        %1415 = vmatprep.subr.mxu0 0.0
        %1416 = vmatpush1.msra.mxu0 0.0
        %1417 = vmatprep.subr.mxu0 0.0
        %1418 = vmatpush1.msra.mxu0 0.0
        %1419 = vmatprep.subr.mxu0 0.0
        %1420 = vmatpush1.msra.mxu0 0.0
        %1421 = vmatprep.subr.mxu0 0.0
        %1422 = vmatpush1.msra.mxu0 0.0
        %1423 = vmatprep.subr.mxu0 0.0
        %1424 = vmatpush1.msra.mxu0 0.0
        %1425 = vmatprep.subr.mxu0 0.0
        %1426 = vmatpush1.msra.mxu0 0.0
        %1427 = vmatprep.mubr.f32.mxu0 0.0
        %v1428 = vand.u32 %v981, 4294901760
        %v1429 = vsub.f32 %v981, %v1428
        %v1430 = vand.u32 %v1429, 4294901760
        %1431 = vmatmul.mubr.f32.gmra.mrb[0].mxu0 %v1430
        %v1432 = vpop.f32.mrb[0].mxu0
        %v1433 = vadd.f32 %v1327, %v1432
        %v1434 = vpop.f32.mrb[0].mxu0
        %v1435 = vadd.f32 %v1329, %v1434
        %1436 = vmatprep.mubr.f32.mxu0 0.0
        %v1437 = vand.u32 %v984, 4294901760
        %v1438 = vsub.f32 %v984, %v1437
        %v1439 = vand.u32 %v1438, 4294901760
        %1440 = vmatmul.mubr.f32.gmra.mrb[0].mxu0 %v1439
        %v1441 = vpop.f32.mrb[0].mxu0
        %v1442 = vadd.f32 %v1335, %v1441
        %v1443 = vpop.f32.mrb[0].mxu0
        %v1444 = vadd.f32 %v1337, %v1443
        %1445 = vmatprep.mubr.f32.mxu0 0.0
        %v1446 = vand.u32 %v987, 4294901760
        %v1447 = vsub.f32 %v987, %v1446
        %v1448 = vand.u32 %v1447, 4294901760
        %1449 = vmatmul.mubr.f32.gmra.mrb[0].mxu0 %v1448
        %v1450 = vpop.f32.mrb[0].mxu0
        %v1451 = vadd.f32 %v1343, %v1450
        %v1452 = vpop.f32.mrb[0].mxu0
        %v1453 = vadd.f32 %v1345, %v1452
        %1454 = vmatprep.mubr.f32.mxu0 0.0
        %v1455 = vand.u32 %v990, 4294901760
        %v1456 = vsub.f32 %v990, %v1455
        %v1457 = vand.u32 %v1456, 4294901760
        %1458 = vmatmul.mubr.f32.gmra.mrb[0].mxu0 %v1457
        %v1459 = vpop.f32.mrb[0].mxu0
        %v1460 = vadd.f32 %v1351, %v1459
        %v1461 = vpop.f32.mrb[0].mxu0
        %v1462 = vadd.f32 %v1353, %v1461
        %1463 = vdwg.mxu0
        %v1464 = vand.u32 %v944, 4294901760
        %v1465 = vsub.f32 %v944, %v1464
        %v1466 = vand.u32 %v1465, 4294901760
        %1467 = vmatprep.subr.mxu0 %v1466
        %v1468 = vand.u32 %v943, 4294901760
        %v1469 = vsub.f32 %v943, %v1468
        %v1470 = vand.u32 %v1469, 4294901760
        %1471 = vmatpush1.msra.mxu0 %v1470
        %v1472 = vand.u32 %v946, 4294901760
        %v1473 = vsub.f32 %v946, %v1472
        %v1474 = vand.u32 %v1473, 4294901760
        %1475 = vmatprep.subr.mxu0 %v1474
        %v1476 = vand.u32 %v945, 4294901760
        %v1477 = vsub.f32 %v945, %v1476
        %v1478 = vand.u32 %v1477, 4294901760
        %1479 = vmatpush1.msra.mxu0 %v1478
        %v1480 = vand.u32 %v948, 4294901760
        %v1481 = vsub.f32 %v948, %v1480
        %v1482 = vand.u32 %v1481, 4294901760
        %1483 = vmatprep.subr.mxu0 %v1482
        %v1484 = vand.u32 %v947, 4294901760
        %v1485 = vsub.f32 %v947, %v1484
        %v1486 = vand.u32 %v1485, 4294901760
        %1487 = vmatpush1.msra.mxu0 %v1486
        %v1488 = vand.u32 %v950, 4294901760
        %v1489 = vsub.f32 %v950, %v1488
        %v1490 = vand.u32 %v1489, 4294901760
        %1491 = vmatprep.subr.mxu0 %v1490
        %v1492 = vand.u32 %v949, 4294901760
        %v1493 = vsub.f32 %v949, %v1492
        %v1494 = vand.u32 %v1493, 4294901760
        %1495 = vmatpush1.msra.mxu0 %v1494
        %1496 = vmatprep.subr.mxu0 0.0
        %1497 = vmatpush1.msra.mxu0 0.0
        %1498 = vmatprep.subr.mxu0 0.0
        %1499 = vmatpush1.msra.mxu0 0.0
        %1500 = vmatprep.subr.mxu0 0.0
        %1501 = vmatpush1.msra.mxu0 0.0
        %1502 = vmatprep.subr.mxu0 0.0
        %1503 = vmatpush1.msra.mxu0 0.0
        %1504 = vmatprep.subr.mxu0 0.0
        %1505 = vmatpush1.msra.mxu0 0.0
        %1506 = vmatprep.subr.mxu0 0.0
        %1507 = vmatpush1.msra.mxu0 0.0
        %1508 = vmatprep.subr.mxu0 0.0
        %1509 = vmatpush1.msra.mxu0 0.0
        %1510 = vmatprep.subr.mxu0 0.0
        %1511 = vmatpush1.msra.mxu0 0.0
        %1512 = vmatprep.subr.mxu0 0.0
        %1513 = vmatpush1.msra.mxu0 0.0
        %1514 = vmatprep.subr.mxu0 0.0
        %1515 = vmatpush1.msra.mxu0 0.0
        %1516 = vmatprep.subr.mxu0 0.0
        %1517 = vmatpush1.msra.mxu0 0.0
        %1518 = vmatprep.subr.mxu0 0.0
        %1519 = vmatpush1.msra.mxu0 0.0
        %1520 = vmatprep.subr.mxu0 0.0
        %1521 = vmatpush1.msra.mxu0 0.0
        %1522 = vmatprep.subr.mxu0 0.0
        %1523 = vmatpush1.msra.mxu0 0.0
        %1524 = vmatprep.subr.mxu0 0.0
        %1525 = vmatpush1.msra.mxu0 0.0
        %1526 = vmatprep.subr.mxu0 0.0
        %1527 = vmatpush1.msra.mxu0 0.0
        %1528 = vmatprep.subr.mxu0 0.0
        %1529 = vmatpush1.msra.mxu0 0.0
        %1530 = vmatprep.subr.mxu0 0.0
        %1531 = vmatpush1.msra.mxu0 0.0
        %1532 = vmatprep.subr.mxu0 0.0
        %1533 = vmatpush1.msra.mxu0 0.0
        %1534 = vmatprep.subr.mxu0 0.0
        %1535 = vmatpush1.msra.mxu0 0.0
        %1536 = vmatprep.subr.mxu0 0.0
        %1537 = vmatpush1.msra.mxu0 0.0
        %1538 = vmatprep.subr.mxu0 0.0
        %1539 = vmatpush1.msra.mxu0 0.0
        %1540 = vmatprep.subr.mxu0 0.0
        %1541 = vmatpush1.msra.mxu0 0.0
        %1542 = vmatprep.subr.mxu0 0.0
        %1543 = vmatpush1.msra.mxu0 0.0
        %1544 = vmatprep.subr.mxu0 0.0
        %1545 = vmatpush1.msra.mxu0 0.0
        %1546 = vmatprep.subr.mxu0 0.0
        %1547 = vmatpush1.msra.mxu0 0.0
        %1548 = vmatprep.subr.mxu0 0.0
        %1549 = vmatpush1.msra.mxu0 0.0
        %1550 = vmatprep.subr.mxu0 0.0
        %1551 = vmatpush1.msra.mxu0 0.0
        %1552 = vmatprep.mubr.f32.mxu0 0.0
        %v1553 = vand.u32 %v981, 4294901760
        %1554 = vmatmul.mubr.f32.gmra.mrb[0].mxu0 %v1553
        %v1555 = vpop.f32.mrb[0].mxu0
        %v1556 = vadd.f32 %v1433, %v1555
        %v1557 = vpop.f32.mrb[0].mxu0
        %v1558 = vadd.f32 %v1435, %v1557
        %1559 = vmatprep.mubr.f32.mxu0 0.0
        %v1560 = vand.u32 %v984, 4294901760
        %1561 = vmatmul.mubr.f32.gmra.mrb[0].mxu0 %v1560
        %v1562 = vpop.f32.mrb[0].mxu0
        %v1563 = vadd.f32 %v1442, %v1562
        %v1564 = vpop.f32.mrb[0].mxu0
        %v1565 = vadd.f32 %v1444, %v1564
        %1566 = vmatprep.mubr.f32.mxu0 0.0
        %v1567 = vand.u32 %v987, 4294901760
        %1568 = vmatmul.mubr.f32.gmra.mrb[0].mxu0 %v1567
        %v1569 = vpop.f32.mrb[0].mxu0
        %v1570 = vadd.f32 %v1451, %v1569
        %v1571 = vpop.f32.mrb[0].mxu0
        %v1572 = vadd.f32 %v1453, %v1571
        %1573 = vmatprep.mubr.f32.mxu0 0.0
        %v1574 = vand.u32 %v990, 4294901760
        %1575 = vmatmul.mubr.f32.gmra.mrb[0].mxu0 %v1574
        %v1576 = vpop.f32.mrb[0].mxu0
        %v1577 = vadd.f32 %v1460, %v1576
        %v1578 = vpop.f32.mrb[0].mxu0
        %v1579 = vadd.f32 %v1462, %v1578
        %1580 = vdwg.mxu0
        %v1581 = vand.u32 %v944, 4294901760
        %1582 = vmatprep.subr.mxu0 %v1581
        %v1583 = vand.u32 %v943, 4294901760
        %1584 = vmatpush1.msra.mxu0 %v1583
        %v1585 = vand.u32 %v946, 4294901760
        %1586 = vmatprep.subr.mxu0 %v1585
        %v1587 = vand.u32 %v945, 4294901760
        %1588 = vmatpush1.msra.mxu0 %v1587
        %v1589 = vand.u32 %v948, 4294901760
        %1590 = vmatprep.subr.mxu0 %v1589
        %v1591 = vand.u32 %v947, 4294901760
        %1592 = vmatpush1.msra.mxu0 %v1591
        %v1593 = vand.u32 %v950, 4294901760
        %1594 = vmatprep.subr.mxu0 %v1593
        %v1595 = vand.u32 %v949, 4294901760
        %1596 = vmatpush1.msra.mxu0 %v1595
        %1597 = vmatprep.subr.mxu0 0.0
        %1598 = vmatpush1.msra.mxu0 0.0
        %1599 = vmatprep.subr.mxu0 0.0
        %1600 = vmatpush1.msra.mxu0 0.0
        %1601 = vmatprep.subr.mxu0 0.0
        %1602 = vmatpush1.msra.mxu0 0.0
        %1603 = vmatprep.subr.mxu0 0.0
        %1604 = vmatpush1.msra.mxu0 0.0
        %1605 = vmatprep.subr.mxu0 0.0
        %1606 = vmatpush1.msra.mxu0 0.0
        %1607 = vmatprep.subr.mxu0 0.0
        %1608 = vmatpush1.msra.mxu0 0.0
        %1609 = vmatprep.subr.mxu0 0.0
        %1610 = vmatpush1.msra.mxu0 0.0
        %1611 = vmatprep.subr.mxu0 0.0
        %1612 = vmatpush1.msra.mxu0 0.0
        %1613 = vmatprep.subr.mxu0 0.0
        %1614 = vmatpush1.msra.mxu0 0.0
        %1615 = vmatprep.subr.mxu0 0.0
        %1616 = vmatpush1.msra.mxu0 0.0
        %1617 = vmatprep.subr.mxu0 0.0
        %1618 = vmatpush1.msra.mxu0 0.0
        %1619 = vmatprep.subr.mxu0 0.0
        %1620 = vmatpush1.msra.mxu0 0.0
        %1621 = vmatprep.subr.mxu0 0.0
        %1622 = vmatpush1.msra.mxu0 0.0
        %1623 = vmatprep.subr.mxu0 0.0
        %1624 = vmatpush1.msra.mxu0 0.0
        %1625 = vmatprep.subr.mxu0 0.0
        %1626 = vmatpush1.msra.mxu0 0.0
        %1627 = vmatprep.subr.mxu0 0.0
        %1628 = vmatpush1.msra.mxu0 0.0
        %1629 = vmatprep.subr.mxu0 0.0
        %1630 = vmatpush1.msra.mxu0 0.0
        %1631 = vmatprep.subr.mxu0 0.0
        %1632 = vmatpush1.msra.mxu0 0.0
        %1633 = vmatprep.subr.mxu0 0.0
        %1634 = vmatpush1.msra.mxu0 0.0
        %1635 = vmatprep.subr.mxu0 0.0
        %1636 = vmatpush1.msra.mxu0 0.0
        %1637 = vmatprep.subr.mxu0 0.0
        %1638 = vmatpush1.msra.mxu0 0.0
        %1639 = vmatprep.subr.mxu0 0.0
        %1640 = vmatpush1.msra.mxu0 0.0
        %1641 = vmatprep.subr.mxu0 0.0
        %1642 = vmatpush1.msra.mxu0 0.0
        %1643 = vmatprep.subr.mxu0 0.0
        %1644 = vmatpush1.msra.mxu0 0.0
        %1645 = vmatprep.subr.mxu0 0.0
        %1646 = vmatpush1.msra.mxu0 0.0
        %1647 = vmatprep.subr.mxu0 0.0
        %1648 = vmatpush1.msra.mxu0 0.0
        %1649 = vmatprep.subr.mxu0 0.0
        %1650 = vmatpush1.msra.mxu0 0.0
        %1651 = vmatprep.subr.mxu0 0.0
        %1652 = vmatpush1.msra.mxu0 0.0
        %1653 = vmatprep.mubr.f32.mxu0 0.0
        %v1654 = vand.u32 %v981, 4294901760
        %1655 = vmatmul.mubr.f32.gmra.mrb[0].mxu0 %v1654
        %v1656 = vpop.f32.mrb[0].mxu0
        %v1657 = vadd.f32 %v1556, %v1656
        %v1658 = vpop.f32.mrb[0].mxu0
        %v1659 = vadd.f32 %v1558, %v1658
        %1660 = vmatprep.mubr.f32.mxu0 0.0
        %v1661 = vand.u32 %v984, 4294901760
        %1662 = vmatmul.mubr.f32.gmra.mrb[0].mxu0 %v1661
        %v1663 = vpop.f32.mrb[0].mxu0
        %v1664 = vadd.f32 %v1563, %v1663
        %v1665 = vpop.f32.mrb[0].mxu0
        %v1666 = vadd.f32 %v1565, %v1665
        %1667 = vmatprep.mubr.f32.mxu0 0.0
        %v1668 = vand.u32 %v987, 4294901760
        %1669 = vmatmul.mubr.f32.gmra.mrb[0].mxu0 %v1668
        %v1670 = vpop.f32.mrb[0].mxu0
        %v1671 = vadd.f32 %v1570, %v1670
        %v1672 = vpop.f32.mrb[0].mxu0
        %v1673 = vadd.f32 %v1572, %v1672
        %1674 = vmatprep.mubr.f32.mxu0 0.0
        %v1675 = vand.u32 %v990, 4294901760
        %1676 = vmatmul.mubr.f32.gmra.mrb[0].mxu0 %v1675
        %v1677 = vpop.f32.mrb[0].mxu0
        %v1678 = vadd.f32 %v1577, %v1677
        %v1679 = vpop.f32.mrb[0].mxu0
        %v1680 = vadd.f32 %v1579, %v1679
        %1681 = vdwg.mxu0
        %v1682 = vtanh.pop %v1657
        %v1683 = vtanh.pop %v1659
        %v1684 = vtanh.pop %v1664
        %v1685 = vtanh.pop %v1666
        %v1686 = vtanh.pop %v1671
        %v1687 = vtanh.pop %v1673
        %v1688 = vtanh.pop %v1678
        %v1689 = vtanh.pop %v1680
        %v1690 = vld [vmem:[%s5] sm:$0x1]
        %v1691 = vld [vmem:[#allocation2] sm:$0x1]
        %1693 = vset.pattern.permute.xlu0 0
        %1694 = vperm.xlu0 %1693, %v1691
        %v1695 = vpop.permute.xlu0 %1694
        %v1697 = vlaneseq
        %v1698 = vshrl.u32 %v1697, 7
        %v1699 = vsub.s32 0, %v1698
        %v1700 = vrot.slane %v1695, %v1699
        %v1702 = vsel %vm979, %v1690, 0
        %v1704 = vand.u32 %v1683, 4294901760
        %1705 = vmatprep.subr.mxu0 %v1704
        %v1706 = vand.u32 %v1682, 4294901760
        %1707 = vmatpush1.msra.mxu0 %v1706
        %v1708 = vand.u32 %v1685, 4294901760
        %1709 = vmatprep.subr.mxu0 %v1708
        %v1710 = vand.u32 %v1684, 4294901760
        %1711 = vmatpush1.msra.mxu0 %v1710
        %v1712 = vand.u32 %v1687, 4294901760
        %1713 = vmatprep.subr.mxu0 %v1712
        %v1714 = vand.u32 %v1686, 4294901760
        %1715 = vmatpush1.msra.mxu0 %v1714
        %v1716 = vand.u32 %v1689, 4294901760
        %1717 = vmatprep.subr.mxu0 %v1716
        %v1718 = vand.u32 %v1688, 4294901760
        %1719 = vmatpush1.msra.mxu0 %v1718
        %1720 = vmatprep.subr.mxu0 0.0
        %1721 = vmatpush1.msra.mxu0 0.0
        %1722 = vmatprep.subr.mxu0 0.0
        %1723 = vmatpush1.msra.mxu0 0.0
        %1724 = vmatprep.subr.mxu0 0.0
        %1725 = vmatpush1.msra.mxu0 0.0
        %1726 = vmatprep.subr.mxu0 0.0
        %1727 = vmatpush1.msra.mxu0 0.0
        %1728 = vmatprep.subr.mxu0 0.0
        %1729 = vmatpush1.msra.mxu0 0.0
        %1730 = vmatprep.subr.mxu0 0.0
        %1731 = vmatpush1.msra.mxu0 0.0
        %1732 = vmatprep.subr.mxu0 0.0
        %1733 = vmatpush1.msra.mxu0 0.0
        %1734 = vmatprep.subr.mxu0 0.0
        %1735 = vmatpush1.msra.mxu0 0.0
        %1736 = vmatprep.subr.mxu0 0.0
        %1737 = vmatpush1.msra.mxu0 0.0
        %1738 = vmatprep.subr.mxu0 0.0
        %1739 = vmatpush1.msra.mxu0 0.0
        %1740 = vmatprep.subr.mxu0 0.0
        %1741 = vmatpush1.msra.mxu0 0.0
        %1742 = vmatprep.subr.mxu0 0.0
        %1743 = vmatpush1.msra.mxu0 0.0
        %1744 = vmatprep.subr.mxu0 0.0
        %1745 = vmatpush1.msra.mxu0 0.0
        %1746 = vmatprep.subr.mxu0 0.0
        %1747 = vmatpush1.msra.mxu0 0.0
        %1748 = vmatprep.subr.mxu0 0.0
        %1749 = vmatpush1.msra.mxu0 0.0
        %1750 = vmatprep.subr.mxu0 0.0
        %1751 = vmatpush1.msra.mxu0 0.0
        %1752 = vmatprep.subr.mxu0 0.0
        %1753 = vmatpush1.msra.mxu0 0.0
        %1754 = vmatprep.subr.mxu0 0.0
        %1755 = vmatpush1.msra.mxu0 0.0
        %1756 = vmatprep.subr.mxu0 0.0
        %1757 = vmatpush1.msra.mxu0 0.0
        %1758 = vmatprep.subr.mxu0 0.0
        %1759 = vmatpush1.msra.mxu0 0.0
        %1760 = vmatprep.subr.mxu0 0.0
        %1761 = vmatpush1.msra.mxu0 0.0
        %1762 = vmatprep.subr.mxu0 0.0
        %1763 = vmatpush1.msra.mxu0 0.0
        %1764 = vmatprep.subr.mxu0 0.0
        %1765 = vmatpush1.msra.mxu0 0.0
        %1766 = vmatprep.subr.mxu0 0.0
        %1767 = vmatpush1.msra.mxu0 0.0
        %1768 = vmatprep.subr.mxu0 0.0
        %1769 = vmatpush1.msra.mxu0 0.0
        %1770 = vmatprep.subr.mxu0 0.0
        %1771 = vmatpush1.msra.mxu0 0.0
        %1772 = vmatprep.subr.mxu0 0.0
        %1773 = vmatpush1.msra.mxu0 0.0
        %1774 = vmatprep.subr.mxu0 0.0
        %1775 = vmatpush1.msra.mxu0 0.0
        %1776 = vmatprep.mubr.f32.mxu0 0.0
        %v1777 = vand.u32 %v1702, 4294901760
        %v1778 = vsub.f32 %v1702, %v1777
        %v1779 = vand.u32 %v1778, 4294901760
        %v1780 = vsub.f32 %v1778, %v1779
        %v1781 = vand.u32 %v1780, 4294901760
        %1782 = vmatmul.mubr.f32.gmra.mrb[0].mxu0 %v1781
        %v1783 = vpop.f32.mrb[0].mxu0
        %v1784 = vadd.f32 %v1700, %v1783
        %v1785 = vpop.f32.mrb[0].mxu0
        %v1786 = vadd.f32 %v1700, %v1785
        %1787 = vdwg.mxu0
        %v1788 = vand.u32 %v1683, 4294901760
        %v1789 = vsub.f32 %v1683, %v1788
        %v1790 = vand.u32 %v1789, 4294901760
        %v1791 = vsub.f32 %v1789, %v1790
        %v1792 = vand.u32 %v1791, 4294901760
        %1793 = vmatprep.subr.mxu0 %v1792
        %v1794 = vand.u32 %v1682, 4294901760
        %v1795 = vsub.f32 %v1682, %v1794
        %v1796 = vand.u32 %v1795, 4294901760
        %v1797 = vsub.f32 %v1795, %v1796
        %v1798 = vand.u32 %v1797, 4294901760
        %1799 = vmatpush1.msra.mxu0 %v1798
        %v1800 = vand.u32 %v1685, 4294901760
        %v1801 = vsub.f32 %v1685, %v1800
        %v1802 = vand.u32 %v1801, 4294901760
        %v1803 = vsub.f32 %v1801, %v1802
        %v1804 = vand.u32 %v1803, 4294901760
        %1805 = vmatprep.subr.mxu0 %v1804
        %v1806 = vand.u32 %v1684, 4294901760
        %v1807 = vsub.f32 %v1684, %v1806
        %v1808 = vand.u32 %v1807, 4294901760
        %v1809 = vsub.f32 %v1807, %v1808
        %v1810 = vand.u32 %v1809, 4294901760
        %1811 = vmatpush1.msra.mxu0 %v1810
        %v1812 = vand.u32 %v1687, 4294901760
        %v1813 = vsub.f32 %v1687, %v1812
        %v1814 = vand.u32 %v1813, 4294901760
        %v1815 = vsub.f32 %v1813, %v1814
        %v1816 = vand.u32 %v1815, 4294901760
        %1817 = vmatprep.subr.mxu0 %v1816
        %v1818 = vand.u32 %v1686, 4294901760
        %v1819 = vsub.f32 %v1686, %v1818
        %v1820 = vand.u32 %v1819, 4294901760
        %v1821 = vsub.f32 %v1819, %v1820
        %v1822 = vand.u32 %v1821, 4294901760
        %1823 = vmatpush1.msra.mxu0 %v1822
        %v1824 = vand.u32 %v1689, 4294901760
        %v1825 = vsub.f32 %v1689, %v1824
        %v1826 = vand.u32 %v1825, 4294901760
        %v1827 = vsub.f32 %v1825, %v1826
        %v1828 = vand.u32 %v1827, 4294901760
        %1829 = vmatprep.subr.mxu0 %v1828
        %v1830 = vand.u32 %v1688, 4294901760
        %v1831 = vsub.f32 %v1688, %v1830
        %v1832 = vand.u32 %v1831, 4294901760
        %v1833 = vsub.f32 %v1831, %v1832
        %v1834 = vand.u32 %v1833, 4294901760
        %1835 = vmatpush1.msra.mxu0 %v1834
        %1836 = vmatprep.subr.mxu0 0.0
        %1837 = vmatpush1.msra.mxu0 0.0
        %1838 = vmatprep.subr.mxu0 0.0
        %1839 = vmatpush1.msra.mxu0 0.0
        %1840 = vmatprep.subr.mxu0 0.0
        %1841 = vmatpush1.msra.mxu0 0.0
        %1842 = vmatprep.subr.mxu0 0.0
        %1843 = vmatpush1.msra.mxu0 0.0
        %1844 = vmatprep.subr.mxu0 0.0
        %1845 = vmatpush1.msra.mxu0 0.0
        %1846 = vmatprep.subr.mxu0 0.0
        %1847 = vmatpush1.msra.mxu0 0.0
        %1848 = vmatprep.subr.mxu0 0.0
        %1849 = vmatpush1.msra.mxu0 0.0
        %1850 = vmatprep.subr.mxu0 0.0
        %1851 = vmatpush1.msra.mxu0 0.0
        %1852 = vmatprep.subr.mxu0 0.0
        %1853 = vmatpush1.msra.mxu0 0.0
        %1854 = vmatprep.subr.mxu0 0.0
        %1855 = vmatpush1.msra.mxu0 0.0
        %1856 = vmatprep.subr.mxu0 0.0
        %1857 = vmatpush1.msra.mxu0 0.0
        %1858 = vmatprep.subr.mxu0 0.0
        %1859 = vmatpush1.msra.mxu0 0.0
        %1860 = vmatprep.subr.mxu0 0.0
        %1861 = vmatpush1.msra.mxu0 0.0
        %1862 = vmatprep.subr.mxu0 0.0
        %1863 = vmatpush1.msra.mxu0 0.0
        %1864 = vmatprep.subr.mxu0 0.0
        %1865 = vmatpush1.msra.mxu0 0.0
        %1866 = vmatprep.subr.mxu0 0.0
        %1867 = vmatpush1.msra.mxu0 0.0
        %1868 = vmatprep.subr.mxu0 0.0
        %1869 = vmatpush1.msra.mxu0 0.0
        %1870 = vmatprep.subr.mxu0 0.0
        %1871 = vmatpush1.msra.mxu0 0.0
        %1872 = vmatprep.subr.mxu0 0.0
        %1873 = vmatpush1.msra.mxu0 0.0
        %1874 = vmatprep.subr.mxu0 0.0
        %1875 = vmatpush1.msra.mxu0 0.0
        %1876 = vmatprep.subr.mxu0 0.0
        %1877 = vmatpush1.msra.mxu0 0.0
        %1878 = vmatprep.subr.mxu0 0.0
        %1879 = vmatpush1.msra.mxu0 0.0
        %1880 = vmatprep.subr.mxu0 0.0
        %1881 = vmatpush1.msra.mxu0 0.0
        %1882 = vmatprep.subr.mxu0 0.0
        %1883 = vmatpush1.msra.mxu0 0.0
        %1884 = vmatprep.subr.mxu0 0.0
        %1885 = vmatpush1.msra.mxu0 0.0
        %1886 = vmatprep.subr.mxu0 0.0
        %1887 = vmatpush1.msra.mxu0 0.0
        %1888 = vmatprep.subr.mxu0 0.0
        %1889 = vmatpush1.msra.mxu0 0.0
        %1890 = vmatprep.subr.mxu0 0.0
        %1891 = vmatpush1.msra.mxu0 0.0
        %1892 = vmatprep.mubr.f32.mxu0 0.0
        %v1893 = vand.u32 %v1702, 4294901760
        %1894 = vmatmul.mubr.f32.gmra.mrb[0].mxu0 %v1893
        %v1895 = vpop.f32.mrb[0].mxu0
        %v1896 = vadd.f32 %v1784, %v1895
        %v1897 = vpop.f32.mrb[0].mxu0
        %v1898 = vadd.f32 %v1786, %v1897
        %1899 = vdwg.mxu0
        %v1900 = vand.u32 %v1683, 4294901760
        %v1901 = vsub.f32 %v1683, %v1900
        %1902 = vmatprep.subr.mxu0 %v1901
        %v1903 = vand.u32 %v1682, 4294901760
        %v1904 = vsub.f32 %v1682, %v1903
        %1905 = vmatpush1.msra.mxu0 %v1904
        %v1906 = vand.u32 %v1685, 4294901760
        %v1907 = vsub.f32 %v1685, %v1906
        %1908 = vmatprep.subr.mxu0 %v1907
        %v1909 = vand.u32 %v1684, 4294901760
        %v1910 = vsub.f32 %v1684, %v1909
        %1911 = vmatpush1.msra.mxu0 %v1910
        %v1912 = vand.u32 %v1687, 4294901760
        %v1913 = vsub.f32 %v1687, %v1912
        %1914 = vmatprep.subr.mxu0 %v1913
        %v1915 = vand.u32 %v1686, 4294901760
        %v1916 = vsub.f32 %v1686, %v1915
        %1917 = vmatpush1.msra.mxu0 %v1916
        %v1918 = vand.u32 %v1689, 4294901760
        %v1919 = vsub.f32 %v1689, %v1918
        %1920 = vmatprep.subr.mxu0 %v1919
        %v1921 = vand.u32 %v1688, 4294901760
        %v1922 = vsub.f32 %v1688, %v1921
        %1923 = vmatpush1.msra.mxu0 %v1922
        %1924 = vmatprep.subr.mxu0 0.0
        %1925 = vmatpush1.msra.mxu0 0.0
        %1926 = vmatprep.subr.mxu0 0.0
        %1927 = vmatpush1.msra.mxu0 0.0
        %1928 = vmatprep.subr.mxu0 0.0
        %1929 = vmatpush1.msra.mxu0 0.0
        %1930 = vmatprep.subr.mxu0 0.0
        %1931 = vmatpush1.msra.mxu0 0.0
        %1932 = vmatprep.subr.mxu0 0.0
        %1933 = vmatpush1.msra.mxu0 0.0
        %1934 = vmatprep.subr.mxu0 0.0
        %1935 = vmatpush1.msra.mxu0 0.0
        %1936 = vmatprep.subr.mxu0 0.0
        %1937 = vmatpush1.msra.mxu0 0.0
        %1938 = vmatprep.subr.mxu0 0.0
        %1939 = vmatpush1.msra.mxu0 0.0
        %1940 = vmatprep.subr.mxu0 0.0
        %1941 = vmatpush1.msra.mxu0 0.0
        %1942 = vmatprep.subr.mxu0 0.0
        %1943 = vmatpush1.msra.mxu0 0.0
        %1944 = vmatprep.subr.mxu0 0.0
        %1945 = vmatpush1.msra.mxu0 0.0
        %1946 = vmatprep.subr.mxu0 0.0
        %1947 = vmatpush1.msra.mxu0 0.0
        %1948 = vmatprep.subr.mxu0 0.0
        %1949 = vmatpush1.msra.mxu0 0.0
        %1950 = vmatprep.subr.mxu0 0.0
        %1951 = vmatpush1.msra.mxu0 0.0
        %1952 = vmatprep.subr.mxu0 0.0
        %1953 = vmatpush1.msra.mxu0 0.0
        %1954 = vmatprep.subr.mxu0 0.0
        %1955 = vmatpush1.msra.mxu0 0.0
        %1956 = vmatprep.subr.mxu0 0.0
        %1957 = vmatpush1.msra.mxu0 0.0
        %1958 = vmatprep.subr.mxu0 0.0
        %1959 = vmatpush1.msra.mxu0 0.0
        %1960 = vmatprep.subr.mxu0 0.0
        %1961 = vmatpush1.msra.mxu0 0.0
        %1962 = vmatprep.subr.mxu0 0.0
        %1963 = vmatpush1.msra.mxu0 0.0
        %1964 = vmatprep.subr.mxu0 0.0
        %1965 = vmatpush1.msra.mxu0 0.0
        %1966 = vmatprep.subr.mxu0 0.0
        %1967 = vmatpush1.msra.mxu0 0.0
        %1968 = vmatprep.subr.mxu0 0.0
        %1969 = vmatpush1.msra.mxu0 0.0
        %1970 = vmatprep.subr.mxu0 0.0
        %1971 = vmatpush1.msra.mxu0 0.0
        %1972 = vmatprep.subr.mxu0 0.0
        %1973 = vmatpush1.msra.mxu0 0.0
        %1974 = vmatprep.subr.mxu0 0.0
        %1975 = vmatpush1.msra.mxu0 0.0
        %1976 = vmatprep.subr.mxu0 0.0
        %1977 = vmatpush1.msra.mxu0 0.0
        %1978 = vmatprep.subr.mxu0 0.0
        %1979 = vmatpush1.msra.mxu0 0.0
        %1980 = vmatprep.mubr.f32.mxu0 0.0
        %v1981 = vand.u32 %v1702, 4294901760
        %v1982 = vsub.f32 %v1702, %v1981
        %1983 = vmatmul.mubr.f32.gmra.mrb[0].mxu0 %v1982
        %v1984 = vpop.f32.mrb[0].mxu0
        %v1985 = vadd.f32 %v1896, %v1984
        %v1986 = vpop.f32.mrb[0].mxu0
        %v1987 = vadd.f32 %v1898, %v1986
        %1988 = vdwg.mxu0
        %v1989 = vand.u32 %v1683, 4294901760
        %1990 = vmatprep.subr.mxu0 %v1989
        %v1991 = vand.u32 %v1682, 4294901760
        %1992 = vmatpush1.msra.mxu0 %v1991
        %v1993 = vand.u32 %v1685, 4294901760
        %1994 = vmatprep.subr.mxu0 %v1993
        %v1995 = vand.u32 %v1684, 4294901760
        %1996 = vmatpush1.msra.mxu0 %v1995
        %v1997 = vand.u32 %v1687, 4294901760
        %1998 = vmatprep.subr.mxu0 %v1997
        %v1999 = vand.u32 %v1686, 4294901760
        %2000 = vmatpush1.msra.mxu0 %v1999
        %v2001 = vand.u32 %v1689, 4294901760
        %2002 = vmatprep.subr.mxu0 %v2001
        %v2003 = vand.u32 %v1688, 4294901760
        %2004 = vmatpush1.msra.mxu0 %v2003
        %2005 = vmatprep.subr.mxu0 0.0
        %2006 = vmatpush1.msra.mxu0 0.0
        %2007 = vmatprep.subr.mxu0 0.0
        %2008 = vmatpush1.msra.mxu0 0.0
        %2009 = vmatprep.subr.mxu0 0.0
        %2010 = vmatpush1.msra.mxu0 0.0
        %2011 = vmatprep.subr.mxu0 0.0
        %2012 = vmatpush1.msra.mxu0 0.0
        %2013 = vmatprep.subr.mxu0 0.0
        %2014 = vmatpush1.msra.mxu0 0.0
        %2015 = vmatprep.subr.mxu0 0.0
        %2016 = vmatpush1.msra.mxu0 0.0
        %2017 = vmatprep.subr.mxu0 0.0
        %2018 = vmatpush1.msra.mxu0 0.0
        %2019 = vmatprep.subr.mxu0 0.0
        %2020 = vmatpush1.msra.mxu0 0.0
        %2021 = vmatprep.subr.mxu0 0.0
        %2022 = vmatpush1.msra.mxu0 0.0
        %2023 = vmatprep.subr.mxu0 0.0
        %2024 = vmatpush1.msra.mxu0 0.0
        %2025 = vmatprep.subr.mxu0 0.0
        %2026 = vmatpush1.msra.mxu0 0.0
        %2027 = vmatprep.subr.mxu0 0.0
        %2028 = vmatpush1.msra.mxu0 0.0
        %2029 = vmatprep.subr.mxu0 0.0
        %2030 = vmatpush1.msra.mxu0 0.0
        %2031 = vmatprep.subr.mxu0 0.0
        %2032 = vmatpush1.msra.mxu0 0.0
        %2033 = vmatprep.subr.mxu0 0.0
        %2034 = vmatpush1.msra.mxu0 0.0
        %2035 = vmatprep.subr.mxu0 0.0
        %2036 = vmatpush1.msra.mxu0 0.0
        %2037 = vmatprep.subr.mxu0 0.0
        %2038 = vmatpush1.msra.mxu0 0.0
        %2039 = vmatprep.subr.mxu0 0.0
        %2040 = vmatpush1.msra.mxu0 0.0
        %2041 = vmatprep.subr.mxu0 0.0
        %2042 = vmatpush1.msra.mxu0 0.0
        %2043 = vmatprep.subr.mxu0 0.0
        %2044 = vmatpush1.msra.mxu0 0.0
        %2045 = vmatprep.subr.mxu0 0.0
        %2046 = vmatpush1.msra.mxu0 0.0
        %2047 = vmatprep.subr.mxu0 0.0
        %2048 = vmatpush1.msra.mxu0 0.0
        %2049 = vmatprep.subr.mxu0 0.0
        %2050 = vmatpush1.msra.mxu0 0.0
        %2051 = vmatprep.subr.mxu0 0.0
        %2052 = vmatpush1.msra.mxu0 0.0
        %2053 = vmatprep.subr.mxu0 0.0
        %2054 = vmatpush1.msra.mxu0 0.0
        %2055 = vmatprep.subr.mxu0 0.0
        %2056 = vmatpush1.msra.mxu0 0.0
        %2057 = vmatprep.subr.mxu0 0.0
        %2058 = vmatpush1.msra.mxu0 0.0
        %2059 = vmatprep.subr.mxu0 0.0
        %2060 = vmatpush1.msra.mxu0 0.0
        %2061 = vmatprep.mubr.f32.mxu0 0.0
        %v2062 = vand.u32 %v1702, 4294901760
        %v2063 = vsub.f32 %v1702, %v2062
        %v2064 = vand.u32 %v2063, 4294901760
        %2065 = vmatmul.mubr.f32.gmra.mrb[0].mxu0 %v2064
        %v2066 = vpop.f32.mrb[0].mxu0
        %v2067 = vadd.f32 %v1985, %v2066
        %v2068 = vpop.f32.mrb[0].mxu0
        %v2069 = vadd.f32 %v1987, %v2068
        %2070 = vdwg.mxu0
        %v2071 = vand.u32 %v1683, 4294901760
        %v2072 = vsub.f32 %v1683, %v2071
        %v2073 = vand.u32 %v2072, 4294901760
        %2074 = vmatprep.subr.mxu0 %v2073
        %v2075 = vand.u32 %v1682, 4294901760
        %v2076 = vsub.f32 %v1682, %v2075
        %v2077 = vand.u32 %v2076, 4294901760
        %2078 = vmatpush1.msra.mxu0 %v2077
        %v2079 = vand.u32 %v1685, 4294901760
        %v2080 = vsub.f32 %v1685, %v2079
        %v2081 = vand.u32 %v2080, 4294901760
        %2082 = vmatprep.subr.mxu0 %v2081
        %v2083 = vand.u32 %v1684, 4294901760
        %v2084 = vsub.f32 %v1684, %v2083
        %v2085 = vand.u32 %v2084, 4294901760
        %2086 = vmatpush1.msra.mxu0 %v2085
        %v2087 = vand.u32 %v1687, 4294901760
        %v2088 = vsub.f32 %v1687, %v2087
        %v2089 = vand.u32 %v2088, 4294901760
        %2090 = vmatprep.subr.mxu0 %v2089
        %v2091 = vand.u32 %v1686, 4294901760
        %v2092 = vsub.f32 %v1686, %v2091
        %v2093 = vand.u32 %v2092, 4294901760
        %2094 = vmatpush1.msra.mxu0 %v2093
        %v2095 = vand.u32 %v1689, 4294901760
        %v2096 = vsub.f32 %v1689, %v2095
        %v2097 = vand.u32 %v2096, 4294901760
        %2098 = vmatprep.subr.mxu0 %v2097
        %v2099 = vand.u32 %v1688, 4294901760
        %v2100 = vsub.f32 %v1688, %v2099
        %v2101 = vand.u32 %v2100, 4294901760
        %2102 = vmatpush1.msra.mxu0 %v2101
        %2103 = vmatprep.subr.mxu0 0.0
        %2104 = vmatpush1.msra.mxu0 0.0
        %2105 = vmatprep.subr.mxu0 0.0
        %2106 = vmatpush1.msra.mxu0 0.0
        %2107 = vmatprep.subr.mxu0 0.0
        %2108 = vmatpush1.msra.mxu0 0.0
        %2109 = vmatprep.subr.mxu0 0.0
        %2110 = vmatpush1.msra.mxu0 0.0
        %2111 = vmatprep.subr.mxu0 0.0
        %2112 = vmatpush1.msra.mxu0 0.0
        %2113 = vmatprep.subr.mxu0 0.0
        %2114 = vmatpush1.msra.mxu0 0.0
        %2115 = vmatprep.subr.mxu0 0.0
        %2116 = vmatpush1.msra.mxu0 0.0
        %2117 = vmatprep.subr.mxu0 0.0
        %2118 = vmatpush1.msra.mxu0 0.0
        %2119 = vmatprep.subr.mxu0 0.0
        %2120 = vmatpush1.msra.mxu0 0.0
        %2121 = vmatprep.subr.mxu0 0.0
        %2122 = vmatpush1.msra.mxu0 0.0
        %2123 = vmatprep.subr.mxu0 0.0
        %2124 = vmatpush1.msra.mxu0 0.0
        %2125 = vmatprep.subr.mxu0 0.0
        %2126 = vmatpush1.msra.mxu0 0.0
        %2127 = vmatprep.subr.mxu0 0.0
        %2128 = vmatpush1.msra.mxu0 0.0
        %2129 = vmatprep.subr.mxu0 0.0
        %2130 = vmatpush1.msra.mxu0 0.0
        %2131 = vmatprep.subr.mxu0 0.0
        %2132 = vmatpush1.msra.mxu0 0.0
        %2133 = vmatprep.subr.mxu0 0.0
        %2134 = vmatpush1.msra.mxu0 0.0
        %2135 = vmatprep.subr.mxu0 0.0
        %2136 = vmatpush1.msra.mxu0 0.0
        %2137 = vmatprep.subr.mxu0 0.0
        %2138 = vmatpush1.msra.mxu0 0.0
        %2139 = vmatprep.subr.mxu0 0.0
        %2140 = vmatpush1.msra.mxu0 0.0
        %2141 = vmatprep.subr.mxu0 0.0
        %2142 = vmatpush1.msra.mxu0 0.0
        %2143 = vmatprep.subr.mxu0 0.0
        %2144 = vmatpush1.msra.mxu0 0.0
        %2145 = vmatprep.subr.mxu0 0.0
        %2146 = vmatpush1.msra.mxu0 0.0
        %2147 = vmatprep.subr.mxu0 0.0
        %2148 = vmatpush1.msra.mxu0 0.0
        %2149 = vmatprep.subr.mxu0 0.0
        %2150 = vmatpush1.msra.mxu0 0.0
        %2151 = vmatprep.subr.mxu0 0.0
        %2152 = vmatpush1.msra.mxu0 0.0
        %2153 = vmatprep.subr.mxu0 0.0
        %2154 = vmatpush1.msra.mxu0 0.0
        %2155 = vmatprep.subr.mxu0 0.0
        %2156 = vmatpush1.msra.mxu0 0.0
        %2157 = vmatprep.subr.mxu0 0.0
        %2158 = vmatpush1.msra.mxu0 0.0
        %2159 = vmatprep.mubr.f32.mxu0 0.0
        %v2160 = vand.u32 %v1702, 4294901760
        %2161 = vmatmul.mubr.f32.gmra.mrb[0].mxu0 %v2160
        %v2162 = vpop.f32.mrb[0].mxu0
        %v2163 = vadd.f32 %v2067, %v2162
        %v2164 = vpop.f32.mrb[0].mxu0
        %v2165 = vadd.f32 %v2069, %v2164
        %2166 = vdwg.mxu0
        %v2167 = vand.u32 %v1683, 4294901760
        %2168 = vmatprep.subr.mxu0 %v2167
        %v2169 = vand.u32 %v1682, 4294901760
        %2170 = vmatpush1.msra.mxu0 %v2169
        %v2171 = vand.u32 %v1685, 4294901760
        %2172 = vmatprep.subr.mxu0 %v2171
        %v2173 = vand.u32 %v1684, 4294901760
        %2174 = vmatpush1.msra.mxu0 %v2173
        %v2175 = vand.u32 %v1687, 4294901760
        %2176 = vmatprep.subr.mxu0 %v2175
        %v2177 = vand.u32 %v1686, 4294901760
        %2178 = vmatpush1.msra.mxu0 %v2177
        %v2179 = vand.u32 %v1689, 4294901760
        %2180 = vmatprep.subr.mxu0 %v2179
        %v2181 = vand.u32 %v1688, 4294901760
        %2182 = vmatpush1.msra.mxu0 %v2181
        %2183 = vmatprep.subr.mxu0 0.0
        %2184 = vmatpush1.msra.mxu0 0.0
        %2185 = vmatprep.subr.mxu0 0.0
        %2186 = vmatpush1.msra.mxu0 0.0
        %2187 = vmatprep.subr.mxu0 0.0
        %2188 = vmatpush1.msra.mxu0 0.0
        %2189 = vmatprep.subr.mxu0 0.0
        %2190 = vmatpush1.msra.mxu0 0.0
        %2191 = vmatprep.subr.mxu0 0.0
        %2192 = vmatpush1.msra.mxu0 0.0
        %2193 = vmatprep.subr.mxu0 0.0
        %2194 = vmatpush1.msra.mxu0 0.0
        %2195 = vmatprep.subr.mxu0 0.0
        %2196 = vmatpush1.msra.mxu0 0.0
        %2197 = vmatprep.subr.mxu0 0.0
        %2198 = vmatpush1.msra.mxu0 0.0
        %2199 = vmatprep.subr.mxu0 0.0
        %2200 = vmatpush1.msra.mxu0 0.0
        %2201 = vmatprep.subr.mxu0 0.0
        %2202 = vmatpush1.msra.mxu0 0.0
        %2203 = vmatprep.subr.mxu0 0.0
        %2204 = vmatpush1.msra.mxu0 0.0
        %2205 = vmatprep.subr.mxu0 0.0
        %2206 = vmatpush1.msra.mxu0 0.0
        %2207 = vmatprep.subr.mxu0 0.0
        %2208 = vmatpush1.msra.mxu0 0.0
        %2209 = vmatprep.subr.mxu0 0.0
        %2210 = vmatpush1.msra.mxu0 0.0
        %2211 = vmatprep.subr.mxu0 0.0
        %2212 = vmatpush1.msra.mxu0 0.0
        %2213 = vmatprep.subr.mxu0 0.0
        %2214 = vmatpush1.msra.mxu0 0.0
        %2215 = vmatprep.subr.mxu0 0.0
        %2216 = vmatpush1.msra.mxu0 0.0
        %2217 = vmatprep.subr.mxu0 0.0
        %2218 = vmatpush1.msra.mxu0 0.0
        %2219 = vmatprep.subr.mxu0 0.0
        %2220 = vmatpush1.msra.mxu0 0.0
        %2221 = vmatprep.subr.mxu0 0.0
        %2222 = vmatpush1.msra.mxu0 0.0
        %2223 = vmatprep.subr.mxu0 0.0
        %2224 = vmatpush1.msra.mxu0 0.0
        %2225 = vmatprep.subr.mxu0 0.0
        %2226 = vmatpush1.msra.mxu0 0.0
        %2227 = vmatprep.subr.mxu0 0.0
        %2228 = vmatpush1.msra.mxu0 0.0
        %2229 = vmatprep.subr.mxu0 0.0
        %2230 = vmatpush1.msra.mxu0 0.0
        %2231 = vmatprep.subr.mxu0 0.0
        %2232 = vmatpush1.msra.mxu0 0.0
        %2233 = vmatprep.subr.mxu0 0.0
        %2234 = vmatpush1.msra.mxu0 0.0
        %2235 = vmatprep.subr.mxu0 0.0
        %2236 = vmatpush1.msra.mxu0 0.0
        %2237 = vmatprep.subr.mxu0 0.0
        %2238 = vmatpush1.msra.mxu0 0.0
        %2239 = vmatprep.mubr.f32.mxu0 0.0
        %v2240 = vand.u32 %v1702, 4294901760
        %2241 = vmatmul.mubr.f32.gmra.mrb[0].mxu0 %v2240
        %v2242 = vpop.f32.mrb[0].mxu0
        %v2243 = vadd.f32 %v2163, %v2242
        %v2244 = vpop.f32.mrb[0].mxu0
        %v2245 = vadd.f32 %v2165, %v2244
        %2246 = vdwg.mxu0
        %v2249 = vcombine.low %v2243, %v2245
        %v2251 = vunpack.c.l.s4 1966171168
        %v2252 = vunpack.c.0.s8 %v2251
        %v2253 = vlaneseq
        %v2254 = vshrl.u32 %v2253, 7
        %v2255 = vsub.s32 %v2252, %v2254
        %v2256 = vrot.slane %v2249, %v2255
        %v2258 = vunpack.c.l.s4 1966171168
        %v2259 = vunpack.c.0.s8 %v2258
        %v2260 = vlaneseq
        %v2261 = vshrl.u32 %v2260, 7
        %v2262 = vsub.s32 %v2259, %v2261
        %v2263 = vrot.slane %v2256, %v2262
        %v2265 = vlaneseq
        %vm2266 = vcmp.ge.s32.totalorder %v2265, 0
        %vm2267 = vcmp.lt.s32.totalorder %v2265, 256
        %vm2268 = vmand %vm2266, %vm2267
        %2269 = vst.msk [vmem:[%s274] sm:$0x3] %vm2268, %v2263
        %s2270 = sand.u32 %s183, 1
        %s2271 = scalar_lea.sflag [#allocation4], %s2270
        %s2272 = sand.u32 %s183, 1
        %s2273 = smul.addr %s2272, 2
        %s2274 = scalar_lea.vmem [#allocation3], %s2273
        // Predicated region
        $region49: #{tpu_custom_call.1} parent=47 // pred_check
          %p2275 = pneg %p193
        $region50: #{tpu_custom_call.1} parent=47 // pred_check_branch
          %2277 = sbr.rel (%p2275) target = $region52
        $region51: #{tpu_custom_call.1} parent=47 // pred_region
          %s2278 = smul.u32 2, %s23
          %s2280 = ssub.s32 32, 32
          %2281 = vsyncadd %s2271, %s2280
          %s2282 = smul.addr %s2278, 16
          %s2283 = scalar_lea.hbm %s7, %s2282
          %s2285 = sshll.u32 %s2274, 4
          %s2286 = int_to_ptr.vmem [resolvable:$true] %s2285
          %2288 = dma.vmem_to_hbm [thread:$0]  %s2286, 32, %s2283, %s2271
        $region52: #{tpu_custom_call.1} parent=47 // pred_fallthru
          _
      $region48: #{tpu_custom_call.1} parent=5 // pred_fallthru
        _
      %p2289 = scmp.le.s32.totalorder 2, %s18
      // Predicated region
      $region53: #{tpu_custom_call.1} parent=5 // pred_check
        %p2290 = pneg %p2289
      $region54: #{tpu_custom_call.1} parent=5 // pred_check_branch
        %2292 = sbr.rel (%p2290) target = $region56
      $region55: #{tpu_custom_call.1} parent=5 // pred_region
        %s2293 = ssub.s32 %s18, 2
        // Predicated region
        $region57: #{tpu_custom_call.1} parent=55 // pred_check
          %p2294 = pneg %p199
        $region58: #{tpu_custom_call.1} parent=55 // pred_check_branch
          %2296 = sbr.rel (%p2294) target = $region60
        $region59: #{tpu_custom_call.1} parent=55 // pred_region
          %s2297 = sand.u32 %s184, 1
          %s2298 = scalar_lea.sflag [#allocation4], %s2297
          %s2299 = sand.u32 %s184, 1
          %s2300 = smul.addr %s2299, 2
          %s2301 = scalar_lea.vmem [#allocation3], %s2300
          %2302 = dma.done %s2298, 32
        $region60: #{tpu_custom_call.1} parent=55 // pred_fallthru
          _
      $region56: #{tpu_custom_call.1} parent=5 // pred_fallthru
        _
    $region6: #{tpu_custom_call.1} parent=1 // loop_footer
      %s22 = sadd.s32 1, %s18
    $region7: #{tpu_custom_call.1} parent=1 // loop_footer_branch
      %17 = sbr.rel target = $region3
    $region8: #{tpu_custom_call.1} parent=1 // loop_exit
      _
    %2303 = vsyncpa [#allocation4], 1
    %s2304 = scalar_lea.sflag [#allocation4], 1
    %2305 = vsyncpa %s2304, 1

</llo_original>
